<compile_context>
chip_gen: v7x
topology: tpu7x:2x2x1
jax: 0.10.0
libtpu: 0.0.40
codegen_flags: <defaults>
</compile_context>

<pallas_src>
import jax
import jax.numpy as jnp
from jax.experimental import pallas as pl
from jax.experimental.pallas import tpu as pltpu

SOBEL_STRENGTH = 1.0
_BN_EPS = 1e-5
_VMEM_LIMIT = 32 * 1024 * 1024   # scoped-VMEM cap safe on v5e/v6e/v7x

# register_buffer contents from EFE.__init__ (used only by the pure-JAX reference)
_SOBEL   = [[-1., -1., -1.], [-1.,  9., -1.], [-1., -1., -1.]]
_SOBEL_X = [[-1.,  0.,  1.], [-2.,  0.,  2.], [-1.,  0.,  1.]]
_SOBEL_Y = [[-1., -2., -1.], [ 0.,  0.,  0.], [ 1.,  2.,  1.]]


def _sigmoid(z):
    # EUP tanh + 2 cheap VPU ops; no VPU divide, no exp+reciprocal pair.
    return 0.5 * jnp.tanh(0.5 * z) + 0.5


def _strength(v):
    return v if SOBEL_STRENGTH == 1.0 else v * SOBEL_STRENGTH


def _efe_fused_kernel(x_ref, gamma_ref, beta_ref, out_ref,
                      pad_ref, g2_ref, sum_ref, sq_ref):
    """Fused EFE forward. grid = (phase, batch); phase 0 = stats, phase 1 = apply."""
    phase = pl.program_id(0)
    b = pl.program_id(1)
    c, hp4, wp4 = pad_ref.shape
    h, w = hp4 - 4, wp4 - 4

    @pl.when((phase == 0) & (b == 0))
    def _init_stats():
        sum_ref[...] = jnp.zeros((c, 1, 1), jnp.float32)
        sq_ref[...] = jnp.zeros((c, 1, 1), jnp.float32)

    @pl.when(phase == 0)
    def _phase0():
        # Zero only the 2-wide border ring; the interior is fully overwritten.
        zrow = jnp.zeros((c, 2, wp4), jnp.float32)
        zcol = jnp.zeros((c, hp4, 2), jnp.float32)
        pad_ref[:, 0:2, :] = zrow
        pad_ref[:, h + 2:h + 4, :] = zrow
        pad_ref[:, :, 0:2] = zcol
        pad_ref[:, :, w + 2:w + 4] = zcol
        pad_ref[:, 2:h + 2, 2:w + 2] = x_ref[0]
        pad = pad_ref[...]                                   # (C, H+4, W+4)

        x_pad = pad[:, 1:h + 3, 1:w + 3]                     # x zero-padded by 1

        # conv #1: sobel = strength*(10*delta - box3x3); box done separably.
        row = pad[:, :, 0:w + 2] + pad[:, :, 1:w + 3] + pad[:, :, 2:w + 4]
        box = row[:, 0:h + 2, :] + row[:, 1:h + 3, :] + row[:, 2:h + 4, :]
        x_o = _strength(10.0 * x_pad - box)                  # (C, H+2, W+2)

        # y on the 1-padded domain; x_pad's zero ring keeps y's ring exactly 0,
        # so the following "valid" convs equal conv(..., padding=1) on y.
        y = _sigmoid(x_o) * x_pad + x_pad                    # (C, H+2, W+2)

        # conv #2/#3: separable Sobel-x / Sobel-y sharing the three column slices.
        c0 = y[:, :, 0:w]
        c1 = y[:, :, 1:w + 1]
        c2 = y[:, :, 2:w + 2]
        dx_h = c2 - c0                                       # horizontal [-1, 0, 1]
        sx_h = c0 + 2.0 * c1 + c2                            # horizontal [ 1, 2, 1]
        gx = _strength(dx_h[:, 0:h, :] + 2.0 * dx_h[:, 1:h + 1, :] + dx_h[:, 2:h + 2, :])
        gy = _strength(sx_h[:, 2:h + 2, :] - sx_h[:, 0:h, :])

        r = gx * gx + gy * gy                                # grad2^2, (C, H, W)
        g2 = jnp.sqrt(r)
        g2_ref[b] = g2                                       # stays VMEM-resident

        # Per-channel BN statistics (lane reduce, then sublane reduce).
        sum_ref[...] += jnp.sum(jnp.sum(g2, axis=2, keepdims=True), axis=1, keepdims=True)
        sq_ref[...] += jnp.sum(jnp.sum(r, axis=2, keepdims=True), axis=1, keepdims=True)

    @pl.when(phase == 1)
    def _phase1():
        cnt = pl.num_programs(1) * h * w
        mean = sum_ref[...] / cnt                                    # (C,1,1)
        var = jnp.maximum(sq_ref[...] / cnt - mean * mean, 0.0)      # biased var
        scale = gamma_ref[...] * jax.lax.rsqrt(var + _BN_EPS)        # (C,1,1)
        shift = beta_ref[...] - mean * scale                         # (C,1,1)

        g = g2_ref[b] * scale + shift                        # BN affine, (C,H,W)
        g = g * _sigmoid(g)                                  # SiLU
        s = jnp.sum(g, axis=0)                               # channel sum, (H,W)
        x1 = jnp.clip(s, 0.0, 1.0)
        out_ref[0, 0] = _sigmoid(x1) * x1 + x1


def efe_forward(x, gamma, beta):
    """x: (N, C, H, W) float32 -> (N, 1, H, W) float32."""
    n, c, h, w = x.shape
    x = x.astype(jnp.float32)
    gamma = gamma.reshape(c, 1, 1).astype(jnp.float32)
    beta = beta.reshape(c, 1, 1).astype(jnp.float32)

    # grad2 stays VMEM-resident across both phases; keep well under v7x's 64 MiB.
    # TODO(synk): recompute-grad2 / W-tiled variant for inputs that exceed this.
    g2_scratch_bytes = n * c * max(h, 8) * max(w, 128) * 4
    assert g2_scratch_bytes < 16 * 1024 * 1024, "input too large for fused VMEM-resident grad2"

    out = pl.pallas_call(
        _efe_fused_kernel,
        out_shape=jax.ShapeDtypeStruct((n, 1, h, w), jnp.float32),
        grid_spec=pltpu.PrefetchScalarGridSpec(
            num_scalar_prefetch=0,
            grid=(2, n),                       # (phase, batch); phase 0 runs first
            in_specs=[
                # x: fetch sample i in phase 0; pin to block 0 in phase 1 (unused).
                pl.BlockSpec((1, c, h, w), lambda p, i: (i * (1 - p), 0, 0, 0)),
                pl.BlockSpec((c, 1, 1), lambda p, i: (0, 0, 0)),   # gamma (resident)
                pl.BlockSpec((c, 1, 1), lambda p, i: (0, 0, 0)),   # beta  (resident)
            ],
            # out: pinned to block 0 in phase 0 (no writeback), sample i in phase 1.
            out_specs=pl.BlockSpec((1, 1, h, w), lambda p, i: (i * p, 0, 0, 0)),
            scratch_shapes=[
                pltpu.VMEM((c, h + 4, w + 4), jnp.float32),   # zero-padded sample
                pltpu.VMEM((n, c, h, w), jnp.float32),        # grad2 (never HBM)
                pltpu.VMEM((c, 1, 1), jnp.float32),           # per-channel sum
                pltpu.VMEM((c, 1, 1), jnp.float32),           # per-channel sum sq
            ],
        ),
        compiler_params=pltpu.CompilerParams(
            # Batch-stat accumulator lives in per-core scratch => keep both axes
            # sequential. (CORE_PARALLEL on v7x would split the batch stats.)
            dimension_semantics=("arbitrary", "arbitrary"),
            vmem_limit_bytes=_VMEM_LIMIT,
        ),
    )(x, gamma, beta)

    # TODO(synk): BatchNorm running_mean/running_var buffer updates (stateful
    # side effect) are not reproduced; only training-mode normalization math is.
    return out


def efe_reference(x, gamma, beta, strength=SOBEL_STRENGTH):
    """Pure-JAX reference mirroring the PyTorch forward (training-mode BN)."""
    c = x.shape[1]
    sob = strength * jnp.array(_SOBEL, jnp.float32)
    sx = strength * jnp.array(_SOBEL_X, jnp.float32)
    sy = strength * jnp.array(_SOBEL_Y, jnp.float32)

    def dw(a, k):
        wgt = jnp.tile(k[None, None], (c, 1, 1, 1))   # (C, 1, 3, 3)
        return jax.lax.conv_general_dilated(
            a, wgt, window_strides=(1, 1), padding=((1, 1), (1, 1)),
            dimension_numbers=("NCHW", "OIHW", "NCHW"), feature_group_count=c)

    x_o = dw(x, sob)
    y = jax.nn.sigmoid(x_o) * x + x
    gx = dw(y, sx)
    gy = dw(y, sy)
    g2 = jnp.sqrt(gx * gx + gy * gy)
    m = jnp.mean(g2, axis=(0, 2, 3), keepdims=True)
    v = jnp.mean((g2 - m) ** 2, axis=(0, 2, 3), keepdims=True)
    g2 = (g2 - m) * jax.lax.rsqrt(v + _BN_EPS)
    g2 = g2 * gamma.reshape(1, c, 1, 1) + beta.reshape(1, c, 1, 1)
    g2 = g2 * jax.nn.sigmoid(g2)
    s = jnp.sum(g2, axis=1, keepdims=True)
    x1 = jnp.clip(s, 0.0, 1.0)
    return jax.nn.sigmoid(x1) * x1 + x1


if __name__ == "__main__":
    key = jax.random.PRNGKey(0)
    N, C, H, W = 2, 4, 16, 16
    kx, kg, kb = jax.random.split(key, 3)
    x = jax.random.normal(kx, (N, C, H, W), dtype=jnp.float32)
    gamma = 1.0 + 0.2 * jax.random.normal(kg, (C,), dtype=jnp.float32)
    beta = 0.1 * jax.random.normal(kb, (C,), dtype=jnp.float32)

    fwd = jax.jit(efe_forward)
    out = jax.block_until_ready(fwd(x, gamma, beta))
    ref = jax.block_until_ready(efe_reference(x, gamma, beta))

    assert out.shape == (N, 1, H, W), out.shape
    max_err = float(jnp.max(jnp.abs(out - ref)))
    assert jnp.allclose(out, ref, atol=1e-3, rtol=1e-3), max_err
    print("KERNEL_OK")
</pallas_src>

<mosaic_0001>
module attributes {stable_mosaic.version = 11 : i64} {
  func.func @_efe_fused_kernel(%arg0: i32, %arg1: i32, %arg2: memref<1x4x16x16xf32, #tpu.memory_space<vmem>>, %arg3: memref<4x1x1xf32, #tpu.memory_space<vmem>>, %arg4: memref<4x1x1xf32, #tpu.memory_space<vmem>>, %arg5: memref<1x1x16x16xf32, #tpu.memory_space<vmem>>, %arg6: memref<4x20x20xf32, #tpu.memory_space<vmem>>, %arg7: memref<2x4x16x16xf32, #tpu.memory_space<vmem>>, %arg8: memref<4x1x1xf32, #tpu.memory_space<vmem>>, %arg9: memref<4x1x1xf32, #tpu.memory_space<vmem>>) attributes {dimension_semantics = [#tpu.dimension_semantics<arbitrary>, #tpu.dimension_semantics<arbitrary>], iteration_bounds = array<i64: 2, 2>, scalar_prefetch = 0 : i64, scratch_operands = 4 : i64, tpu.core_type = #tpu.core_type<tc>, window_params = [{transform_indices = @transform_0, window_bounds = array<i64: 1, 4, 16, 16>}, {pipeline_mode = #tpu.pipeline_mode<synchronous>, transform_indices = @transform_1, window_bounds = array<i64: 4, 1, 1>}, {pipeline_mode = #tpu.pipeline_mode<synchronous>, transform_indices = @transform_2, window_bounds = array<i64: 4, 1, 1>}, {transform_indices = @transform_3, window_bounds = array<i64: 1, 1, 16, 16>}]} {
    %c0_i32 = arith.constant 0 : i32
    %0 = arith.cmpi eq, %arg0, %c0_i32 : i32
    %c0_i32_0 = arith.constant 0 : i32
    %1 = arith.cmpi eq, %arg1, %c0_i32_0 : i32
    %2 = arith.andi %0, %1 : i1
    %3 = arith.extui %2 : i1 to i32
    %c0_i32_1 = arith.constant 0 : i32
    %4 = arith.cmpi ne, %3, %c0_i32_1 : i32
    scf.if %4 {
      %cst = arith.constant 0.000000e+00 : f32
      %11 = vector.broadcast %cst : f32 to vector<4x1x1xf32>
      %c0 = arith.constant 0 : index
      %c0_5 = arith.constant 0 : index
      %c0_6 = arith.constant 0 : index
      %12 = vector.load %arg8[%c0, %c0_5, %c0_6] : memref<4x1x1xf32, #tpu.memory_space<vmem>>, vector<4x1x1xf32>
      tpu.vector_store %arg8[%c0, %c0_5, %c0_6], %11 {strides = array<i32>} : memref<4x1x1xf32, #tpu.memory_space<vmem>>, vector<4x1x1xf32>,
      %cst_7 = arith.constant 0.000000e+00 : f32
      %13 = vector.broadcast %cst_7 : f32 to vector<4x1x1xf32>
      %c0_8 = arith.constant 0 : index
      %c0_9 = arith.constant 0 : index
      %c0_10 = arith.constant 0 : index
      %14 = vector.load %arg9[%c0_8, %c0_9, %c0_10] : memref<4x1x1xf32, #tpu.memory_space<vmem>>, vector<4x1x1xf32>
      tpu.vector_store %arg9[%c0_8, %c0_9, %c0_10], %13 {strides = array<i32>} : memref<4x1x1xf32, #tpu.memory_space<vmem>>, vector<4x1x1xf32>,
    } else {
    }
    %c0_i32_2 = arith.constant 0 : i32
    %5 = arith.cmpi eq, %arg0, %c0_i32_2 : i32
    %6 = arith.extui %5 : i1 to i32
    %c0_i32_3 = arith.constant 0 : i32
    %7 = arith.cmpi ne, %6, %c0_i32_3 : i32
    scf.if %7 {
      %cst = arith.constant 0.000000e+00 : f32
      %11 = vector.broadcast %cst : f32 to vector<4x2x20xf32>
      %cst_5 = arith.constant 0.000000e+00 : f32
      %12 = vector.broadcast %cst_5 : f32 to vector<4x20x2xf32>
      %c0 = arith.constant 0 : index
      %c0_6 = arith.constant 0 : index
      %c0_7 = arith.constant 0 : index
      %13 = vector.load %arg6[%c0, %c0_6, %c0_7] : memref<4x20x20xf32, #tpu.memory_space<vmem>>, vector<4x2x20xf32>
      tpu.vector_store %arg6[%c0, %c0_6, %c0_7], %11 {strides = array<i32>} : memref<4x20x20xf32, #tpu.memory_space<vmem>>, vector<4x2x20xf32>,
      %c0_8 = arith.constant 0 : index
      %c18 = arith.constant 18 : index
      %c0_9 = arith.constant 0 : index
      %14 = vector.load %arg6[%c0_8, %c18, %c0_9] : memref<4x20x20xf32, #tpu.memory_space<vmem>>, vector<4x2x20xf32>
      tpu.vector_store %arg6[%c0_8, %c18, %c0_9], %11 {strides = array<i32>} : memref<4x20x20xf32, #tpu.memory_space<vmem>>, vector<4x2x20xf32>,
      %c0_10 = arith.constant 0 : index
      %c0_11 = arith.constant 0 : index
      %c0_12 = arith.constant 0 : index
      %15 = vector.load %arg6[%c0_10, %c0_11, %c0_12] : memref<4x20x20xf32, #tpu.memory_space<vmem>>, vector<4x20x2xf32>
      tpu.vector_store %arg6[%c0_10, %c0_11, %c0_12], %12 {strides = array<i32>} : memref<4x20x20xf32, #tpu.memory_space<vmem>>, vector<4x20x2xf32>,
      %c0_13 = arith.constant 0 : index
      %c0_14 = arith.constant 0 : index
      %c18_15 = arith.constant 18 : index
      %16 = vector.load %arg6[%c0_13, %c0_14, %c18_15] : memref<4x20x20xf32, #tpu.memory_space<vmem>>, vector<4x20x2xf32>
      tpu.vector_store %arg6[%c0_13, %c0_14, %c18_15], %12 {strides = array<i32>} : memref<4x20x20xf32, #tpu.memory_space<vmem>>, vector<4x20x2xf32>,
      %c0_16 = arith.constant 0 : index
      %c0_17 = arith.constant 0 : index
      %c0_18 = arith.constant 0 : index
      %c0_19 = arith.constant 0 : index
      %17 = vector.load %arg2[%c0_16, %c0_17, %c0_18, %c0_19] : memref<1x4x16x16xf32, #tpu.memory_space<vmem>>, vector<1x4x16x16xf32>
      %18 = vector.shape_cast %17 : vector<1x4x16x16xf32> to vector<4x16x16xf32>
      %c0_20 = arith.constant 0 : index
      %c2 = arith.constant 2 : index
      %c2_21 = arith.constant 2 : index
      %19 = vector.load %arg6[%c0_20, %c2, %c2_21] : memref<4x20x20xf32, #tpu.memory_space<vmem>>, vector<4x16x16xf32>
      tpu.vector_store %arg6[%c0_20, %c2, %c2_21], %18 {strides = array<i32>} : memref<4x20x20xf32, #tpu.memory_space<vmem>>, vector<4x16x16xf32>,
      %c0_22 = arith.constant 0 : index
      %c0_23 = arith.constant 0 : index
      %c0_24 = arith.constant 0 : index
      %20 = vector.load %arg6[%c0_22, %c0_23, %c0_24] : memref<4x20x20xf32, #tpu.memory_space<vmem>>, vector<4x20x20xf32>
      %21 = vector.extract_strided_slice %20 {offsets = [0, 1, 1], sizes = [4, 18, 18], strides = [1, 1, 1]} : vector<4x20x20xf32> to vector<4x18x18xf32>
      %22 = vector.extract_strided_slice %20 {offsets = [0, 0, 0], sizes = [4, 20, 18], strides = [1, 1, 1]} : vector<4x20x20xf32> to vector<4x20x18xf32>
      %23 = vector.extract_strided_slice %20 {offsets = [0, 0, 1], sizes = [4, 20, 18], strides = [1, 1, 1]} : vector<4x20x20xf32> to vector<4x20x18xf32>
      %24 = arith.addf %22, %23 : vector<4x20x18xf32>
      %25 = vector.extract_strided_slice %20 {offsets = [0, 0, 2], sizes = [4, 20, 18], strides = [1, 1, 1]} : vector<4x20x20xf32> to vector<4x20x18xf32>
      %26 = arith.addf %24, %25 : vector<4x20x18xf32>
      %27 = vector.extract_strided_slice %26 {offsets = [0, 0, 0], sizes = [4, 18, 18], strides = [1, 1, 1]} : vector<4x20x18xf32> to vector<4x18x18xf32>
      %28 = vector.extract_strided_slice %26 {offsets = [0, 1, 0], sizes = [4, 18, 18], strides = [1, 1, 1]} : vector<4x20x18xf32> to vector<4x18x18xf32>
      %29 = arith.addf %27, %28 : vector<4x18x18xf32>
      %30 = vector.extract_strided_slice %26 {offsets = [0, 2, 0], sizes = [4, 18, 18], strides = [1, 1, 1]} : vector<4x20x18xf32> to vector<4x18x18xf32>
      %31 = arith.addf %29, %30 : vector<4x18x18xf32>
      %cst_25 = arith.constant 1.000000e+01 : f32
      %32 = vector.broadcast %cst_25 : f32 to vector<4x18x18xf32>
      %33 = arith.mulf %32, %21 : vector<4x18x18xf32>
      %34 = arith.subf %33, %31 : vector<4x18x18xf32>
      %cst_26 = arith.constant 5.000000e-01 : f32
      %35 = vector.broadcast %cst_26 : f32 to vector<4x18x18xf32>
      %36 = arith.mulf %35, %34 : vector<4x18x18xf32>
      %37 = math.tanh %36 : vector<4x18x18xf32>
      %cst_27 = arith.constant 5.000000e-01 : f32
      %38 = vector.broadcast %cst_27 : f32 to vector<4x18x18xf32>
      %39 = arith.mulf %38, %37 : vector<4x18x18xf32>
      %cst_28 = arith.constant 5.000000e-01 : f32
      %40 = vector.broadcast %cst_28 : f32 to vector<4x18x18xf32>
      %41 = arith.addf %39, %40 : vector<4x18x18xf32>
      %42 = arith.mulf %41, %21 : vector<4x18x18xf32>
      %43 = arith.addf %42, %21 : vector<4x18x18xf32>
      %44 = vector.extract_strided_slice %43 {offsets = [0, 0, 0], sizes = [4, 18, 16], strides = [1, 1, 1]} : vector<4x18x18xf32> to vector<4x18x16xf32>
      %45 = vector.extract_strided_slice %43 {offsets = [0, 0, 1], sizes = [4, 18, 16], strides = [1, 1, 1]} : vector<4x18x18xf32> to vector<4x18x16xf32>
      %46 = vector.extract_strided_slice %43 {offsets = [0, 0, 2], sizes = [4, 18, 16], strides = [1, 1, 1]} : vector<4x18x18xf32> to vector<4x18x16xf32>
      %47 = arith.subf %46, %44 : vector<4x18x16xf32>
      %cst_29 = arith.constant 2.000000e+00 : f32
      %48 = vector.broadcast %cst_29 : f32 to vector<4x18x16xf32>
      %49 = arith.mulf %48, %45 : vector<4x18x16xf32>
      %50 = arith.addf %44, %49 : vector<4x18x16xf32>
      %51 = arith.addf %50, %46 : vector<4x18x16xf32>
      %52 = vector.extract_strided_slice %47 {offsets = [0, 0, 0], sizes = [4, 16, 16], strides = [1, 1, 1]} : vector<4x18x16xf32> to vector<4x16x16xf32>
      %53 = vector.extract_strided_slice %47 {offsets = [0, 1, 0], sizes = [4, 16, 16], strides = [1, 1, 1]} : vector<4x18x16xf32> to vector<4x16x16xf32>
      %cst_30 = arith.constant 2.000000e+00 : f32
      %54 = vector.broadcast %cst_30 : f32 to vector<4x16x16xf32>
      %55 = arith.mulf %54, %53 : vector<4x16x16xf32>
      %56 = arith.addf %52, %55 : vector<4x16x16xf32>
      %57 = vector.extract_strided_slice %47 {offsets = [0, 2, 0], sizes = [4, 16, 16], strides = [1, 1, 1]} : vector<4x18x16xf32> to vector<4x16x16xf32>
      %58 = arith.addf %56, %57 : vector<4x16x16xf32>
      %59 = vector.extract_strided_slice %51 {offsets = [0, 2, 0], sizes = [4, 16, 16], strides = [1, 1, 1]} : vector<4x18x16xf32> to vector<4x16x16xf32>
      %60 = vector.extract_strided_slice %51 {offsets = [0, 0, 0], sizes = [4, 16, 16], strides = [1, 1, 1]} : vector<4x18x16xf32> to vector<4x16x16xf32>
      %61 = arith.subf %59, %60 : vector<4x16x16xf32>
      %62 = arith.mulf %58, %58 : vector<4x16x16xf32>
      %63 = arith.mulf %61, %61 : vector<4x16x16xf32>
      %64 = arith.addf %62, %63 : vector<4x16x16xf32>
      %65 = math.sqrt %64 : vector<4x16x16xf32>
      %66 = arith.index_cast %arg1 : i32 to index
      %c0_31 = arith.constant 0 : index
      %c0_32 = arith.constant 0 : index
      %c0_33 = arith.constant 0 : index
      %67 = vector.load %arg7[%66, %c0_31, %c0_32, %c0_33] : memref<2x4x16x16xf32, #tpu.memory_space<vmem>>, vector<1x4x16x16xf32>
      %68 = vector.shape_cast %67 : vector<1x4x16x16xf32> to vector<4x16x16xf32>
      %69 = vector.shape_cast %65 : vector<4x16x16xf32> to vector<1x4x16x16xf32>
      tpu.vector_store %arg7[%66, %c0_31, %c0_32, %c0_33], %69 {strides = array<i32>} : memref<2x4x16x16xf32, #tpu.memory_space<vmem>>, vector<1x4x16x16xf32>,
      %c0_34 = arith.constant 0 : index
      %c0_35 = arith.constant 0 : index
      %c0_36 = arith.constant 0 : index
      %70 = vector.load %arg8[%c0_34, %c0_35, %c0_36] : memref<4x1x1xf32, #tpu.memory_space<vmem>>, vector<4x1x1xf32>
      %cst_37 = arith.constant dense<0.000000e+00> : vector<4x16xf32>
      %71 = vector.multi_reduction <add>, %65, %cst_37 [2] : vector<4x16x16xf32> to vector<4x16xf32>
      %72 = vector.shape_cast %71 : vector<4x16xf32> to vector<4x16x1xf32>
      %cst_38 = arith.constant dense<0.000000e+00> : vector<4x1xf32>
      %73 = vector.multi_reduction <add>, %72, %cst_38 [1] : vector<4x16x1xf32> to vector<4x1xf32>
      %74 = vector.shape_cast %73 : vector<4x1xf32> to vector<4x1x1xf32>
      %75 = arith.addf %70, %74 : vector<4x1x1xf32>
      %c0_39 = arith.constant 0 : index
      %c0_40 = arith.constant 0 : index
      %c0_41 = arith.constant 0 : index
      %76 = vector.load %arg8[%c0_39, %c0_40, %c0_41] : memref<4x1x1xf32, #tpu.memory_space<vmem>>, vector<4x1x1xf32>
      tpu.vector_store %arg8[%c0_39, %c0_40, %c0_41], %75 {strides = array<i32>} : memref<4x1x1xf32, #tpu.memory_space<vmem>>, vector<4x1x1xf32>,
      %c0_42 = arith.constant 0 : index
      %c0_43 = arith.constant 0 : index
      %c0_44 = arith.constant 0 : index
      %77 = vector.load %arg9[%c0_42, %c0_43, %c0_44] : memref<4x1x1xf32, #tpu.memory_space<vmem>>, vector<4x1x1xf32>
      %cst_45 = arith.constant dense<0.000000e+00> : vector<4x16xf32>
      %78 = vector.multi_reduction <add>, %64, %cst_45 [2] : vector<4x16x16xf32> to vector<4x16xf32>
      %79 = vector.shape_cast %78 : vector<4x16xf32> to vector<4x16x1xf32>
      %cst_46 = arith.constant dense<0.000000e+00> : vector<4x1xf32>
      %80 = vector.multi_reduction <add>, %79, %cst_46 [1] : vector<4x16x1xf32> to vector<4x1xf32>
      %81 = vector.shape_cast %80 : vector<4x1xf32> to vector<4x1x1xf32>
      %82 = arith.addf %77, %81 : vector<4x1x1xf32>
      %c0_47 = arith.constant 0 : index
      %c0_48 = arith.constant 0 : index
      %c0_49 = arith.constant 0 : index
      %83 = vector.load %arg9[%c0_47, %c0_48, %c0_49] : memref<4x1x1xf32, #tpu.memory_space<vmem>>, vector<4x1x1xf32>
      tpu.vector_store %arg9[%c0_47, %c0_48, %c0_49], %82 {strides = array<i32>} : memref<4x1x1xf32, #tpu.memory_space<vmem>>, vector<4x1x1xf32>,
    } else {
    }
    %c1_i32 = arith.constant 1 : i32
    %8 = arith.cmpi eq, %arg0, %c1_i32 : i32
    %9 = arith.extui %8 : i1 to i32
    %c0_i32_4 = arith.constant 0 : i32
    %10 = arith.cmpi ne, %9, %c0_i32_4 : i32
    scf.if %10 {
      %c0 = arith.constant 0 : index
      %c0_5 = arith.constant 0 : index
      %c0_6 = arith.constant 0 : index
      %11 = vector.load %arg8[%c0, %c0_5, %c0_6] : memref<4x1x1xf32, #tpu.memory_space<vmem>>, vector<4x1x1xf32>
      %cst = arith.constant 5.120000e+02 : f32
      %12 = vector.broadcast %cst : f32 to vector<4x1x1xf32>
      %13 = arith.divf %11, %12 : vector<4x1x1xf32>
      %c0_7 = arith.constant 0 : index
      %c0_8 = arith.constant 0 : index
      %c0_9 = arith.constant 0 : index
      %14 = vector.load %arg9[%c0_7, %c0_8, %c0_9] : memref<4x1x1xf32, #tpu.memory_space<vmem>>, vector<4x1x1xf32>
      %cst_10 = arith.constant 5.120000e+02 : f32
      %15 = vector.broadcast %cst_10 : f32 to vector<4x1x1xf32>
      %16 = arith.divf %14, %15 : vector<4x1x1xf32>
      %17 = arith.mulf %13, %13 : vector<4x1x1xf32>
      %18 = arith.subf %16, %17 : vector<4x1x1xf32>
      %cst_11 = arith.constant 0.000000e+00 : f32
      %19 = vector.broadcast %cst_11 : f32 to vector<4x1x1xf32>
      %20 = arith.maximumf %18, %19 : vector<4x1x1xf32>
      %c0_12 = arith.constant 0 : index
      %c0_13 = arith.constant 0 : index
      %c0_14 = arith.constant 0 : index
      %21 = vector.load %arg3[%c0_12, %c0_13, %c0_14] : memref<4x1x1xf32, #tpu.memory_space<vmem>>, vector<4x1x1xf32>
      %cst_15 = arith.constant 9.99999974E-6 : f32
      %22 = vector.broadcast %cst_15 : f32 to vector<4x1x1xf32>
      %23 = arith.addf %20, %22 : vector<4x1x1xf32>
      %24 = math.rsqrt %23 : vector<4x1x1xf32>
      %25 = arith.mulf %21, %24 : vector<4x1x1xf32>
      %c0_16 = arith.constant 0 : index
      %c0_17 = arith.constant 0 : index
      %c0_18 = arith.constant 0 : index
      %26 = vector.load %arg4[%c0_16, %c0_17, %c0_18] : memref<4x1x1xf32, #tpu.memory_space<vmem>>, vector<4x1x1xf32>
      %27 = arith.mulf %13, %25 : vector<4x1x1xf32>
      %28 = arith.subf %26, %27 : vector<4x1x1xf32>
      %29 = arith.index_cast %arg1 : i32 to index
      %c0_19 = arith.constant 0 : index
      %c0_20 = arith.constant 0 : index
      %c0_21 = arith.constant 0 : index
      %30 = vector.load %arg7[%29, %c0_19, %c0_20, %c0_21] : memref<2x4x16x16xf32, #tpu.memory_space<vmem>>, vector<1x4x16x16xf32>
      %31 = vector.shape_cast %30 : vector<1x4x16x16xf32> to vector<4x16x16xf32>
      %32 = vector.broadcast %25 : vector<4x1x1xf32> to vector<4x16x16xf32>
      %33 = arith.mulf %31, %32 : vector<4x16x16xf32>
      %34 = vector.broadcast %28 : vector<4x1x1xf32> to vector<4x16x16xf32>
      %35 = arith.addf %33, %34 : vector<4x16x16xf32>
      %cst_22 = arith.constant 5.000000e-01 : f32
      %36 = vector.broadcast %cst_22 : f32 to vector<4x16x16xf32>
      %37 = arith.mulf %36, %35 : vector<4x16x16xf32>
      %38 = math.tanh %37 : vector<4x16x16xf32>
      %cst_23 = arith.constant 5.000000e-01 : f32
      %39 = vector.broadcast %cst_23 : f32 to vector<4x16x16xf32>
      %40 = arith.mulf %39, %38 : vector<4x16x16xf32>
      %cst_24 = arith.constant 5.000000e-01 : f32
      %41 = vector.broadcast %cst_24 : f32 to vector<4x16x16xf32>
      %42 = arith.addf %40, %41 : vector<4x16x16xf32>
      %43 = arith.mulf %35, %42 : vector<4x16x16xf32>
      %cst_25 = arith.constant dense<0.000000e+00> : vector<16x16xf32>
      %44 = vector.multi_reduction <add>, %43, %cst_25 [0] : vector<4x16x16xf32> to vector<16x16xf32>
      %cst_26 = arith.constant 0.000000e+00 : f32
      %cst_27 = arith.constant 1.000000e+00 : f32
      %45 = vector.broadcast %cst_26 : f32 to vector<16x16xf32>
      %46 = arith.maximumf %45, %44 : vector<16x16xf32>
      %47 = vector.broadcast %cst_27 : f32 to vector<16x16xf32>
      %48 = arith.minimumf %47, %46 : vector<16x16xf32>
      %cst_28 = arith.constant 5.000000e-01 : f32
      %49 = vector.broadcast %cst_28 : f32 to vector<16x16xf32>
      %50 = arith.mulf %49, %48 : vector<16x16xf32>
      %51 = math.tanh %50 : vector<16x16xf32>
      %cst_29 = arith.constant 5.000000e-01 : f32
      %52 = vector.broadcast %cst_29 : f32 to vector<16x16xf32>
      %53 = arith.mulf %52, %51 : vector<16x16xf32>
      %cst_30 = arith.constant 5.000000e-01 : f32
      %54 = vector.broadcast %cst_30 : f32 to vector<16x16xf32>
      %55 = arith.addf %53, %54 : vector<16x16xf32>
      %56 = arith.mulf %55, %48 : vector<16x16xf32>
      %57 = arith.addf %56, %48 : vector<16x16xf32>
      %c0_31 = arith.constant 0 : index
      %c0_32 = arith.constant 0 : index
      %c0_33 = arith.constant 0 : index
      %c0_34 = arith.constant 0 : index
      %58 = vector.load %arg5[%c0_31, %c0_32, %c0_33, %c0_34] : memref<1x1x16x16xf32, #tpu.memory_space<vmem>>, vector<1x1x16x16xf32>
      %59 = vector.shape_cast %58 : vector<1x1x16x16xf32> to vector<16x16xf32>
      %60 = vector.shape_cast %57 : vector<16x16xf32> to vector<1x1x16x16xf32>
      tpu.vector_store %arg5[%c0_31, %c0_32, %c0_33, %c0_34], %60 {strides = array<i32>} : memref<1x1x16x16xf32, #tpu.memory_space<vmem>>, vector<1x1x16x16xf32>,
    } else {
    }
    return
  }
  func.func @transform_0(%arg0: i32, %arg1: i32) -> (i32, i32, i32, i32) {
    %c1_i32 = arith.constant 1 : i32
    %0 = arith.subi %c1_i32, %arg0 : i32
    %1 = arith.muli %arg1, %0 : i32
    %c0_i32 = arith.constant 0 : i32
    %c0_i32_0 = arith.constant 0 : i32
    %c0_i32_1 = arith.constant 0 : i32
    %c0_i32_2 = arith.constant 0 : i32
    return %1, %c0_i32, %c0_i32_0, %c0_i32_1 : i32, i32, i32, i32
  }
  func.func @transform_1(%arg0: i32, %arg1: i32) -> (i32, i32, i32) {
    %c0_i32 = arith.constant 0 : i32
    %c0_i32_0 = arith.constant 0 : i32
    %c0_i32_1 = arith.constant 0 : i32
    %c0_i32_2 = arith.constant 0 : i32
    return %c0_i32, %c0_i32_0, %c0_i32_1 : i32, i32, i32
  }
  func.func @transform_2(%arg0: i32, %arg1: i32) -> (i32, i32, i32) {
    %c0_i32 = arith.constant 0 : i32
    %c0_i32_0 = arith.constant 0 : i32
    %c0_i32_1 = arith.constant 0 : i32
    %c0_i32_2 = arith.constant 0 : i32
    return %c0_i32, %c0_i32_0, %c0_i32_1 : i32, i32, i32
  }
  func.func @transform_3(%arg0: i32, %arg1: i32) -> (i32, i32, i32, i32) {
    %0 = arith.muli %arg1, %arg0 : i32
    %c0_i32 = arith.constant 0 : i32
    %c0_i32_0 = arith.constant 0 : i32
    %c0_i32_1 = arith.constant 0 : i32
    %c0_i32_2 = arith.constant 0 : i32
    return %0, %c0_i32, %c0_i32_0, %c0_i32_1 : i32, i32, i32, i32
  }
}

</mosaic_0001>

<llo_original>
// kernel: efe_forward.1
$region0: #{efe_forward.1}
  #allocation0 [shape = 'u32[]', space=smem, size = 0x4, offset = 0x4, fixed_abs, tag = 'smem constant byte address 0x4 - core index']
  #allocation1 [shape = 'u32[144,128]{1,0:T(1,128)}', space=vmem, size = 0x12000, scoped, tag = 'internal scratch']
  #allocation2 [shape = 'f32[4,20,20]{2,1,0:T(8,128)}', space=vmem, size = 0xc000, scoped, tag = 'scratch operand']
  #allocation3 [shape = 'f32[2,4,16,16]{3,2,1,0:T(8,128)}', space=vmem, size = 0x10000, scoped, tag = 'scratch operand']
  #allocation4 [shape = 'f32[4,1,1]{2,1,0:T(1,128)}', space=vmem, size = 0x800, scoped, tag = 'scratch operand']
  #allocation5 [shape = 'f32[4,1,1]{2,1,0:T(1,128)}', space=vmem, size = 0x800, scoped, tag = 'scratch operand']
  %s0 = inlined_call_operand.hbm [shape: f32[2,4,16,16], index: 0, kind: input, shape index: {}]
  %s1 = inlined_call_operand.vmem [shape: f32[4,1,1], index: 1, kind: input, shape index: {}]
  %s2 = inlined_call_operand.vmem [shape: f32[4,1,1], index: 2, kind: input, shape index: {}]
  %s3 = inlined_call_operand.hbm [shape: f32[2,1,16,16], index: 3, kind: output, shape index: {}]
  %s4 = sld [smem:[#allocation0]]
  $region61: #{efe_forward.1} parent=0
    _
  %s6 = ssub.s32 1, %s4
  %s7 = scalar_select 0, %s6, %s4
  $region1: #{efe_forward.1} parent=0
    #allocation6 [shape = 'u8[65536]{0}', space=vmem, size = 0x10000, scoped, tag = 'input window, operand 0']
    #allocation7 [shape = 's32[2]{0}', space=sflag, size = 0x8, scoped, tag = 'scoped memory for efe_forward.1']
    #allocation8 [shape = 's32[2]{0}', space=sflag, size = 0x8, scoped, tag = 'scoped memory for efe_forward.1']
    #allocation9 [shape = 'u8[16384]{0}', space=vmem, size = 0x4000, scoped, tag = 'output window, operand 0']
    %8 = vsyncpa [#allocation7], 0
    %s9 = scalar_lea.sflag [#allocation7], 1
    %10 = vsyncpa %s9, 0
    %11 = vsyncpa [#allocation8], 0
    %s12 = scalar_lea.sflag [#allocation8], 1
    %13 = vsyncpa %s12, 0
    loop: start=0, step=1, limit=6
    $region2: #{efe_forward.1} parent=1 // loop_pre_header
      _
    $region3: #{efe_forward.1} parent=1 // loop_header
      %s15 = sphi 0, %s19
      %p16 = scmp.ge.s32.totalorder %s15, 6
      %s22 = sphi 0, %s34
      %s23 = sphi 0, %s30
      %s24 = sphi 0, %s22
      %s25 = sphi 0, %s23
      %s26 = sphi 0, %s24
      %s27 = sphi 0, %s25
      %s41 = sphi 0, %s43
      %s44 = sphi 0, %s41
      %s45 = sphi 0, %s44
      %s61 = sphi 0, %s45
      %s65 = sphi 0, %s65
      %s67 = sphi 0, %s65
      %s68 = sphi 0, %s67
      %s82 = sphi 0, %s68
      %s86 = sphi 0, %s86
      %s88 = sphi 0, %s86
      %s89 = sphi 0, %s88
      %s103 = sphi 0, %s89
      %s111 = sphi 0, %s113
      %s114 = sphi 0, %s111
      %s115 = sphi 0, %s114
      %s131 = sphi 0, %s115
    $region4: #{efe_forward.1} parent=1 // loop_header_branch
      %18 = sbr.rel (%p16) target = $region8
    $region5: #{efe_forward.1} parent=1 // loop_body
      %s20 = ssub.s32 %s15, 1
      %s21 = ssub.s32 %s15, 2
      %s28 = sadd.s32 1, %s23
      %p29 = scmp.ge.s32.totalorder %s28, 2
      %s30 = scalar_select %p29, 0, %s28
      %s31 = sadd.s32 1, %s22
      %s32 = scalar_select %p29, %s31, %s22
      %p33 = scmp.ge.s32.totalorder %s32, 2
      %s34 = scalar_select %p33, 0, %s32
      %s35 = ssub.s32 1, %s22
      %s36 = smul.u32 %s23, %s35
      %s37 = ssub.s32 1, %s34
      %s38 = smul.u32 %s30, %s37
      %s39 = ssub.s32 %s36, %s38
      %p40 = scmp.eq.s32.totalorder %s39, 0
      %s42 = sadd.s32 %s41, 1
      %s43 = scalar_select %p40, %s41, %s42
      %p46 = pneg %p40
      %p47 = scmp.eq.s32.totalorder %s15, 3
      %p48 = por %p46, %p47
      %p49 = scmp.ne.s32.totalorder %s41, %s44
      %p50 = scmp.eq.s32.totalorder %s15, 0
      %p51 = por %p49, %p50
      %p52 = scmp.ne.s32.totalorder %s41, %s44
      %p53 = scmp.eq.s32.totalorder %s20, 3
      %p54 = por %p52, %p53
      %p55 = scmp.ne.s32.totalorder %s44, %s45
      %p56 = scmp.eq.s32.totalorder %s20, 0
      %p57 = por %p55, %p56
      %p58 = scmp.ne.s32.totalorder %s44, %s45
      %p59 = scmp.eq.s32.totalorder %s21, 3
      %p60 = por %p58, %p59
      %p62 = scmp.ne.s32.totalorder %s45, %s61
      %p63 = scmp.eq.s32.totalorder %s21, 0
      %p64 = por %p62, %p63
      %s66 = sadd.s32 %s65, 1
      %p69 = scmp.eq.s32.totalorder %s15, 3
      %p70 = scmp.ne.s32.totalorder %s65, %s67
      %p71 = scmp.eq.s32.totalorder %s15, 0
      %p72 = por %p70, %p71
      %p73 = scmp.ne.s32.totalorder %s65, %s67
      %p74 = scmp.eq.s32.totalorder %s20, 3
      %p75 = por %p73, %p74
      %p76 = scmp.ne.s32.totalorder %s67, %s68
      %p77 = scmp.eq.s32.totalorder %s20, 0
      %p78 = por %p76, %p77
      %p79 = scmp.ne.s32.totalorder %s67, %s68
      %p80 = scmp.eq.s32.totalorder %s21, 3
      %p81 = por %p79, %p80
      %p83 = scmp.ne.s32.totalorder %s68, %s82
      %p84 = scmp.eq.s32.totalorder %s21, 0
      %p85 = por %p83, %p84
      %s87 = sadd.s32 %s86, 1
      %p90 = scmp.eq.s32.totalorder %s15, 3
      %p91 = scmp.ne.s32.totalorder %s86, %s88
      %p92 = scmp.eq.s32.totalorder %s15, 0
      %p93 = por %p91, %p92
      %p94 = scmp.ne.s32.totalorder %s86, %s88
      %p95 = scmp.eq.s32.totalorder %s20, 3
      %p96 = por %p94, %p95
      %p97 = scmp.ne.s32.totalorder %s88, %s89
      %p98 = scmp.eq.s32.totalorder %s20, 0
      %p99 = por %p97, %p98
      %p100 = scmp.ne.s32.totalorder %s88, %s89
      %p101 = scmp.eq.s32.totalorder %s21, 3
      %p102 = por %p100, %p101
      %p104 = scmp.ne.s32.totalorder %s89, %s103
      %p105 = scmp.eq.s32.totalorder %s21, 0
      %p106 = por %p104, %p105
      %s107 = smul.u32 %s23, %s22
      %s108 = smul.u32 %s30, %s34
      %s109 = ssub.s32 %s107, %s108
      %p110 = scmp.eq.s32.totalorder %s109, 0
      %s112 = sadd.s32 %s111, 1
      %s113 = scalar_select %p110, %s111, %s112
      %p116 = pneg %p110
      %p117 = scmp.eq.s32.totalorder %s15, 3
      %p118 = por %p116, %p117
      %p119 = scmp.ne.s32.totalorder %s111, %s114
      %p120 = scmp.eq.s32.totalorder %s15, 0
      %p121 = por %p119, %p120
      %p122 = scmp.ne.s32.totalorder %s111, %s114
      %p123 = scmp.eq.s32.totalorder %s20, 3
      %p124 = por %p122, %p123
      %p125 = scmp.ne.s32.totalorder %s114, %s115
      %p126 = scmp.eq.s32.totalorder %s20, 0
      %p127 = por %p125, %p126
      %p128 = scmp.ne.s32.totalorder %s114, %s115
      %p129 = scmp.eq.s32.totalorder %s21, 3
      %p130 = por %p128, %p129
      %p132 = scmp.ne.s32.totalorder %s115, %s131
      %p133 = scmp.eq.s32.totalorder %s21, 0
      %p134 = por %p132, %p133
      %p135 = scmp.le.s32.totalorder 1, %s15
      %p136 = scmp.lt.s32.totalorder %s15, 5
      %p137 = pnand %p135, %p136
      %p138 = pneg %p137
      // Predicated region
      $region9: #{efe_forward.1} parent=5 // pred_check
        _
      $region10: #{efe_forward.1} parent=5 // pred_check_branch
        %140 = sbr.rel (%p137) target = $region12
      $region11: #{efe_forward.1} parent=5 // pred_region
        %s141 = ssub.s32 %s15, 1
        // Predicated region
        $region13: #{efe_forward.1} parent=11 // pred_check
          %p142 = pneg %p78
        $region14: #{efe_forward.1} parent=11 // pred_check_branch
          %144 = sbr.rel (%p142) target = $region16
        $region15: #{efe_forward.1} parent=11 // pred_region
          _
        $region16: #{efe_forward.1} parent=11 // pred_fallthru
          _
        // Predicated region
        $region17: #{efe_forward.1} parent=11 // pred_check
          %p145 = pneg %p99
        $region18: #{efe_forward.1} parent=11 // pred_check_branch
          %147 = sbr.rel (%p145) target = $region20
        $region19: #{efe_forward.1} parent=11 // pred_region
          _
        $region20: #{efe_forward.1} parent=11 // pred_fallthru
          _
      $region12: #{efe_forward.1} parent=5 // pred_fallthru
        _
      %p148 = scmp.lt.s32.totalorder %s15, 4
      // Predicated region
      $region21: #{efe_forward.1} parent=5 // pred_check
        %p149 = pneg %p148
      $region22: #{efe_forward.1} parent=5 // pred_check_branch
        %151 = sbr.rel (%p149) target = $region24
      $region23: #{efe_forward.1} parent=5 // pred_region
        // Predicated region
        $region25: #{efe_forward.1} parent=23 // pred_check
          %p152 = pneg %p51
        $region26: #{efe_forward.1} parent=23 // pred_check_branch
          %154 = sbr.rel (%p152) target = $region28
        $region27: #{efe_forward.1} parent=23 // pred_region
          %s155 = sand.u32 %s41, 1
          %s156 = scalar_lea.sflag [#allocation7], %s155
          %s157 = sand.u32 %s41, 1
          %s158 = smul.addr %s157, 64
          %s159 = scalar_lea.vmem [#allocation6], %s158
          %s160 = ssub.s32 1, %s22
          %s161 = smul.u32 %s23, %s160
          %s163 = ssub.s32 1024, 1024
          %164 = vsyncadd %s156, %s163
          %s165 = smul.addr %s161, 8
          %s166 = smul.addr %s165, 128
          %s167 = scalar_lea.hbm %s0, %s166
          %s168 = sshll.u32 %s159, 4
          %s169 = int_to_ptr.vmem [resolvable:$true] %s168
          %174 = dma.hbm_to_vmem [thread:$0]  %s167, 1024, %s169, %s156, 128, 128, 8
        $region28: #{efe_forward.1} parent=23 // pred_fallthru
          _
      $region24: #{efe_forward.1} parent=5 // pred_fallthru
        _
      %p175 = scmp.le.s32.totalorder 1, %s15
      %p176 = scmp.lt.s32.totalorder %s15, 5
      %p177 = pnand %p175, %p176
      %p178 = pneg %p177
      // Predicated region
      $region29: #{efe_forward.1} parent=5 // pred_check
        _
      $region30: #{efe_forward.1} parent=5 // pred_check_branch
        %180 = sbr.rel (%p177) target = $region32
      $region31: #{efe_forward.1} parent=5 // pred_region
        %s181 = ssub.s32 %s15, 1
        %s182 = sand.u32 %s44, 1
        %s183 = scalar_lea.sflag [#allocation7], %s182
        %s184 = sand.u32 %s44, 1
        %s185 = smul.addr %s184, 64
        %s186 = scalar_lea.vmem [#allocation6], %s185
        // Predicated region
        $region33: #{efe_forward.1} parent=31 // pred_check
          %p187 = pneg %p57
        $region34: #{efe_forward.1} parent=31 // pred_check_branch
          %189 = sbr.rel (%p187) target = $region36
        $region35: #{efe_forward.1} parent=31 // pred_region
          %190 = dma.done %s183, 1024
        $region36: #{efe_forward.1} parent=31 // pred_fallthru
          _
        %s191 = sand.u32 %s44, 1
        %s192 = scalar_lea.sflag [#allocation7], %s191
        %s193 = sand.u32 %s44, 1
        %s194 = smul.addr %s193, 64
        %s195 = scalar_lea.vmem [#allocation6], %s194
        %p196 = pneg %p57
        %p197 = pneg %p54
        %p198 = pneg %p78
        %p199 = pneg %p75
        %p200 = pneg %p99
        %p201 = pneg %p96
        %p202 = pneg %p127
        %p203 = pneg %p124
        %s204 = sand.u32 %s114, 1
        %s205 = scalar_lea.sflag [#allocation8], %s204
        %s206 = sand.u32 %s114, 1
        %s207 = smul.addr %s206, 16
        %s208 = scalar_lea.vmem [#allocation9], %s207
        %s209 = ssub.s32 1, %s24
        %s210 = smul.u32 %s25, %s209
        %s211 = smul.u32 %s25, %s24
        %p212 = scmp.eq.s32.totalorder %s24, 0
        %p213 = scmp.eq.s32.totalorder %s25, 0
        %p214 = pnand %p212, %p213
        %p215 = pneg %p214
        // Predicated region
        $region37: #{efe_forward.1} parent=31 // pred_check
          _
        $region38: #{efe_forward.1} parent=31 // pred_check_branch
          %217 = sbr.rel (%p214) target = $region40
        $region39: #{efe_forward.1} parent=31 // pred_region
          %vm218 = vcmask 0
          %219 = vst.msk [vmem:[#allocation4] sm:$0x1] %vm218, 0.0
          %220 = vst.msk [vmem:[#allocation4 + $0x1] sm:$0x1] %vm218, 0.0
          %221 = vst.msk [vmem:[#allocation4 + $0x2] sm:$0x1] %vm218, 0.0
          %222 = vst.msk [vmem:[#allocation4 + $0x3] sm:$0x1] %vm218, 0.0
          %223 = vst.msk [vmem:[#allocation5] sm:$0x1] %vm218, 0.0
          %224 = vst.msk [vmem:[#allocation5 + $0x1] sm:$0x1] %vm218, 0.0
          %225 = vst.msk [vmem:[#allocation5 + $0x2] sm:$0x1] %vm218, 0.0
          %226 = vst.msk [vmem:[#allocation5 + $0x3] sm:$0x1] %vm218, 0.0
        $region40: #{efe_forward.1} parent=31 // pred_fallthru
          _
        // Predicated region
        $region41: #{efe_forward.1} parent=31 // pred_check
          %p227 = pneg %p212
        $region42: #{efe_forward.1} parent=31 // pred_check_branch
          %229 = sbr.rel (%p227) target = $region44
        $region43: #{efe_forward.1} parent=31 // pred_region
          %vm230 = vcmask 156672
          %231 = vst.msk [vmem:[#allocation2] sm:$0x3] %vm230, 0.0
          %232 = vst.msk [vmem:[#allocation2 + $0x18] sm:$0x3] %vm230, 0.0
          %233 = vst.msk [vmem:[#allocation2 + $0x30] sm:$0x3] %vm230, 0.0
          %234 = vst.msk [vmem:[#allocation2 + $0x48] sm:$0x3] %vm230, 0.0
          %235 = vst.msk [vmem:[#allocation2 + $0x12] sm:$0x3] %vm230, 0.0
          %236 = vst.msk [vmem:[#allocation2 + $0x2a] sm:$0x3] %vm230, 0.0
          %237 = vst.msk [vmem:[#allocation2 + $0x42] sm:$0x3] %vm230, 0.0
          %238 = vst.msk [vmem:[#allocation2 + $0x5a] sm:$0x3] %vm230, 0.0
          %vm239 = vcmask 15360
          %240 = vst.msk [vmem:[#allocation2] sm:$0xff] %vm239, 0.0
          %241 = vst.msk [vmem:[#allocation2 + $0x8] sm:$0xff] %vm239, 0.0
          %vm242 = vcmask 11264
          %243 = vst.msk [vmem:[#allocation2 + $0x10] sm:$0xf] %vm242, 0.0
          %244 = vst.msk [vmem:[#allocation2 + $0x18] sm:$0xff] %vm239, 0.0
          %245 = vst.msk [vmem:[#allocation2 + $0x20] sm:$0xff] %vm239, 0.0
          %246 = vst.msk [vmem:[#allocation2 + $0x28] sm:$0xf] %vm242, 0.0
          %247 = vst.msk [vmem:[#allocation2 + $0x30] sm:$0xff] %vm239, 0.0
          %248 = vst.msk [vmem:[#allocation2 + $0x38] sm:$0xff] %vm239, 0.0
          %249 = vst.msk [vmem:[#allocation2 + $0x40] sm:$0xf] %vm242, 0.0
          %250 = vst.msk [vmem:[#allocation2 + $0x48] sm:$0xff] %vm239, 0.0
          %251 = vst.msk [vmem:[#allocation2 + $0x50] sm:$0xff] %vm239, 0.0
          %252 = vst.msk [vmem:[#allocation2 + $0x58] sm:$0xf] %vm242, 0.0
          %vm253 = vcmask 162960
          %254 = vst.msk [vmem:[#allocation2] sm:$0xff] %vm253, 0.0
          %255 = vst.msk [vmem:[#allocation2 + $0x8] sm:$0xff] %vm253, 0.0
          %vm256 = vcmask 158864
          %257 = vst.msk [vmem:[#allocation2 + $0x10] sm:$0xf] %vm256, 0.0
          %258 = vst.msk [vmem:[#allocation2 + $0x18] sm:$0xff] %vm253, 0.0
          %259 = vst.msk [vmem:[#allocation2 + $0x20] sm:$0xff] %vm253, 0.0
          %260 = vst.msk [vmem:[#allocation2 + $0x28] sm:$0xf] %vm256, 0.0
          %261 = vst.msk [vmem:[#allocation2 + $0x30] sm:$0xff] %vm253, 0.0
          %262 = vst.msk [vmem:[#allocation2 + $0x38] sm:$0xff] %vm253, 0.0
          %263 = vst.msk [vmem:[#allocation2 + $0x40] sm:$0xf] %vm256, 0.0
          %264 = vst.msk [vmem:[#allocation2 + $0x48] sm:$0xff] %vm253, 0.0
          %265 = vst.msk [vmem:[#allocation2 + $0x50] sm:$0xff] %vm253, 0.0
          %266 = vst.msk [vmem:[#allocation2 + $0x58] sm:$0xf] %vm256, 0.0
          %v267 = vld [vmem:[%s186] sm:$0xff]
          %v268 = vld [vmem:[%s186 + $0x8] sm:$0xff]
          %v269 = vld [vmem:[%s186 + $0x10] sm:$0xff]
          %v270 = vld [vmem:[%s186 + $0x18] sm:$0xff]
          %v271 = vld [vmem:[%s186 + $0x20] sm:$0xff]
          %v272 = vld [vmem:[%s186 + $0x28] sm:$0xff]
          %v273 = vld [vmem:[%s186 + $0x30] sm:$0xff]
          %v274 = vld [vmem:[%s186 + $0x38] sm:$0xff]
          %283 = vrot.lane.b32.xlu0 %v267, 2
          %v284 = vpop.permute.xlu0 %283
          %285 = vrot.lane.b32.xlu0 %v268, 2
          %v286 = vpop.permute.xlu0 %285
          %287 = vrot.lane.b32.xlu0 %v269, 2
          %v288 = vpop.permute.xlu0 %287
          %289 = vrot.lane.b32.xlu0 %v270, 2
          %v290 = vpop.permute.xlu0 %289
          %291 = vrot.lane.b32.xlu0 %v271, 2
          %v292 = vpop.permute.xlu0 %291
          %293 = vrot.lane.b32.xlu0 %v272, 2
          %v294 = vpop.permute.xlu0 %293
          %295 = vrot.lane.b32.xlu0 %v273, 2
          %v296 = vpop.permute.xlu0 %295
          %297 = vrot.lane.b32.xlu0 %v274, 2
          %v298 = vpop.permute.xlu0 %297
          %vm307 = vcmask 146448
          %308 = vst.msk [vmem:[#allocation2 + $0x2] sm:$0xff] %vm307, %v284
          %309 = vst.msk [vmem:[#allocation2 + $0xa] sm:$0xff] %vm307, %v286
          %310 = vst.msk [vmem:[#allocation2 + $0x1a] sm:$0xff] %vm307, %v288
          %311 = vst.msk [vmem:[#allocation2 + $0x22] sm:$0xff] %vm307, %v290
          %312 = vst.msk [vmem:[#allocation2 + $0x32] sm:$0xff] %vm307, %v292
          %313 = vst.msk [vmem:[#allocation2 + $0x3a] sm:$0xff] %vm307, %v294
          %314 = vst.msk [vmem:[#allocation2 + $0x4a] sm:$0xff] %vm307, %v296
          %315 = vst.msk [vmem:[#allocation2 + $0x52] sm:$0xff] %vm307, %v298
          %v316 = vld [vmem:[#allocation2] sm:$0xff]
          %v317 = vld [vmem:[#allocation2 + $0x8] sm:$0xff]
          %v318 = vld [vmem:[#allocation2 + $0x10] sm:$0xf]
          %v319 = vld [vmem:[#allocation2 + $0x18] sm:$0xff]
          %v320 = vld [vmem:[#allocation2 + $0x20] sm:$0xff]
          %v321 = vld [vmem:[#allocation2 + $0x28] sm:$0xf]
          %v322 = vld [vmem:[#allocation2 + $0x30] sm:$0xff]
          %v323 = vld [vmem:[#allocation2 + $0x38] sm:$0xff]
          %v324 = vld [vmem:[#allocation2 + $0x40] sm:$0xf]
          %v325 = vld [vmem:[#allocation2 + $0x48] sm:$0xff]
          %v326 = vld [vmem:[#allocation2 + $0x50] sm:$0xff]
          %v327 = vld [vmem:[#allocation2 + $0x58] sm:$0xf]
          %340 = vrot.lane.b32.xlu0 %v316, 127
          %v341 = vpop.permute.xlu0 %340
          %342 = vrot.lane.b32.xlu0 %v317, 127
          %v343 = vpop.permute.xlu0 %342
          %344 = vrot.lane.b32.xlu0 %v318, 127
          %v345 = vpop.permute.xlu0 %344
          %346 = vrot.lane.b32.xlu0 %v319, 127
          %v347 = vpop.permute.xlu0 %346
          %348 = vrot.lane.b32.xlu0 %v320, 127
          %v349 = vpop.permute.xlu0 %348
          %350 = vrot.lane.b32.xlu0 %v321, 127
          %v351 = vpop.permute.xlu0 %350
          %352 = vrot.lane.b32.xlu0 %v322, 127
          %v353 = vpop.permute.xlu0 %352
          %354 = vrot.lane.b32.xlu0 %v323, 127
          %v355 = vpop.permute.xlu0 %354
          %356 = vrot.lane.b32.xlu0 %v324, 127
          %v357 = vpop.permute.xlu0 %356
          %358 = vrot.lane.b32.xlu0 %v325, 127
          %v359 = vpop.permute.xlu0 %358
          %360 = vrot.lane.b32.xlu0 %v326, 127
          %v361 = vpop.permute.xlu0 %360
          %362 = vrot.lane.b32.xlu0 %v327, 127
          %v363 = vpop.permute.xlu0 %362
          %v376 = vadd.f32 %v316, %v341
          %v377 = vadd.f32 %v317, %v343
          %v378 = vadd.f32 %v318, %v345
          %v379 = vadd.f32 %v319, %v347
          %v380 = vadd.f32 %v320, %v349
          %v381 = vadd.f32 %v321, %v351
          %v382 = vadd.f32 %v322, %v353
          %v383 = vadd.f32 %v323, %v355
          %v384 = vadd.f32 %v324, %v357
          %v385 = vadd.f32 %v325, %v359
          %v386 = vadd.f32 %v326, %v361
          %v387 = vadd.f32 %v327, %v363
          %388 = vrot.lane.b32.xlu0 %v316, 126
          %v389 = vpop.permute.xlu0 %388
          %390 = vrot.lane.b32.xlu0 %v317, 126
          %v391 = vpop.permute.xlu0 %390
          %392 = vrot.lane.b32.xlu0 %v318, 126
          %v393 = vpop.permute.xlu0 %392
          %394 = vrot.lane.b32.xlu0 %v319, 126
          %v395 = vpop.permute.xlu0 %394
          %396 = vrot.lane.b32.xlu0 %v320, 126
          %v397 = vpop.permute.xlu0 %396
          %398 = vrot.lane.b32.xlu0 %v321, 126
          %v399 = vpop.permute.xlu0 %398
          %400 = vrot.lane.b32.xlu0 %v322, 126
          %v401 = vpop.permute.xlu0 %400
          %402 = vrot.lane.b32.xlu0 %v323, 126
          %v403 = vpop.permute.xlu0 %402
          %404 = vrot.lane.b32.xlu0 %v324, 126
          %v405 = vpop.permute.xlu0 %404
          %406 = vrot.lane.b32.xlu0 %v325, 126
          %v407 = vpop.permute.xlu0 %406
          %408 = vrot.lane.b32.xlu0 %v326, 126
          %v409 = vpop.permute.xlu0 %408
          %410 = vrot.lane.b32.xlu0 %v327, 126
          %v411 = vpop.permute.xlu0 %410
          %v424 = vadd.f32 %v376, %v389
          %v425 = vadd.f32 %v377, %v391
          %v426 = vadd.f32 %v378, %v393
          %v427 = vadd.f32 %v379, %v395
          %v428 = vadd.f32 %v380, %v397
          %v429 = vadd.f32 %v381, %v399
          %v430 = vadd.f32 %v382, %v401
          %v431 = vadd.f32 %v383, %v403
          %v432 = vadd.f32 %v384, %v405
          %v433 = vadd.f32 %v385, %v407
          %v434 = vadd.f32 %v386, %v409
          %v435 = vadd.f32 %v387, %v411
          %vm448 = vcmask 1046528
          %v449 = vrot.slane %v424, 1
          %v450 = vrot.slane %v425, 1
          %v451 = vsel %vm448, %v449, %v450
          %v452 = vrot.slane %v426, 1
          %v453 = vsel %vm448, %v450, %v452
          %v454 = vrot.slane %v427, 1
          %v455 = vrot.slane %v428, 1
          %v456 = vsel %vm448, %v454, %v455
          %v457 = vrot.slane %v429, 1
          %v458 = vsel %vm448, %v455, %v457
          %v459 = vrot.slane %v430, 1
          %v460 = vrot.slane %v431, 1
          %v461 = vsel %vm448, %v459, %v460
          %v462 = vrot.slane %v432, 1
          %v463 = vsel %vm448, %v460, %v462
          %v464 = vrot.slane %v433, 1
          %v465 = vrot.slane %v434, 1
          %v466 = vsel %vm448, %v464, %v465
          %v467 = vrot.slane %v435, 1
          %v468 = vsel %vm448, %v465, %v467
          %v481 = vadd.f32 %v424, %v451
          %v482 = vadd.f32 %v425, %v453
          %v483 = vadd.f32 %v426, %v452
          %v484 = vadd.f32 %v427, %v456
          %v485 = vadd.f32 %v428, %v458
          %v486 = vadd.f32 %v429, %v457
          %v487 = vadd.f32 %v430, %v461
          %v488 = vadd.f32 %v431, %v463
          %v489 = vadd.f32 %v432, %v462
          %v490 = vadd.f32 %v433, %v466
          %v491 = vadd.f32 %v434, %v468
          %v492 = vadd.f32 %v435, %v467
          %vm493 = vcmask 1045504
          %v494 = vrot.slane %v424, 2
          %v495 = vrot.slane %v425, 2
          %v496 = vsel %vm493, %v494, %v495
          %v497 = vrot.slane %v426, 2
          %v498 = vsel %vm493, %v495, %v497
          %v499 = vrot.slane %v427, 2
          %v500 = vrot.slane %v428, 2
          %v501 = vsel %vm493, %v499, %v500
          %v502 = vrot.slane %v429, 2
          %v503 = vsel %vm493, %v500, %v502
          %v504 = vrot.slane %v430, 2
          %v505 = vrot.slane %v431, 2
          %v506 = vsel %vm493, %v504, %v505
          %v507 = vrot.slane %v432, 2
          %v508 = vsel %vm493, %v505, %v507
          %v509 = vrot.slane %v433, 2
          %v510 = vrot.slane %v434, 2
          %v511 = vsel %vm493, %v509, %v510
          %v512 = vrot.slane %v435, 2
          %v513 = vsel %vm493, %v510, %v512
          %v526 = vadd.f32 %v481, %v496
          %v527 = vadd.f32 %v482, %v498
          %v528 = vadd.f32 %v483, %v497
          %v529 = vadd.f32 %v484, %v501
          %v530 = vadd.f32 %v485, %v503
          %v531 = vadd.f32 %v486, %v502
          %v532 = vadd.f32 %v487, %v506
          %v533 = vadd.f32 %v488, %v508
          %v534 = vadd.f32 %v489, %v507
          %v535 = vadd.f32 %v490, %v511
          %v536 = vadd.f32 %v491, %v513
          %v537 = vadd.f32 %v492, %v512
          %v538 = vmul.f32 %v316, 10.0
          %v539 = vmul.f32 %v317, 10.0
          %v540 = vmul.f32 %v318, 10.0
          %v541 = vmul.f32 %v319, 10.0
          %v542 = vmul.f32 %v320, 10.0
          %v543 = vmul.f32 %v321, 10.0
          %v544 = vmul.f32 %v322, 10.0
          %v545 = vmul.f32 %v323, 10.0
          %v546 = vmul.f32 %v324, 10.0
          %v547 = vmul.f32 %v325, 10.0
          %v548 = vmul.f32 %v326, 10.0
          %v549 = vmul.f32 %v327, 10.0
          %vm562 = vcmask 1040384
          %v563 = vrot.slane %v526, 7
          %v564 = vrot.slane %v527, 7
          %v565 = vsel %vm562, %v563, %v564
          %v566 = vrot.slane %v528, 7
          %v567 = vsel %vm562, %v564, %v566
          %v568 = vrot.slane %v529, 7
          %v569 = vrot.slane %v530, 7
          %v570 = vsel %vm562, %v568, %v569
          %v571 = vrot.slane %v531, 7
          %v572 = vsel %vm562, %v569, %v571
          %v573 = vrot.slane %v532, 7
          %v574 = vrot.slane %v533, 7
          %v575 = vsel %vm562, %v573, %v574
          %v576 = vrot.slane %v534, 7
          %v577 = vsel %vm562, %v574, %v576
          %v578 = vrot.slane %v535, 7
          %v579 = vrot.slane %v536, 7
          %v580 = vsel %vm562, %v578, %v579
          %v581 = vrot.slane %v537, 7
          %v582 = vsel %vm562, %v579, %v581
          %583 = vrot.lane.b32.xlu0 %v563, 1
          %v584 = vpop.permute.xlu0 %583
          %585 = vrot.lane.b32.xlu0 %v565, 1
          %v586 = vpop.permute.xlu0 %585
          %587 = vrot.lane.b32.xlu0 %v567, 1
          %v588 = vpop.permute.xlu0 %587
          %589 = vrot.lane.b32.xlu0 %v568, 1
          %v590 = vpop.permute.xlu0 %589
          %591 = vrot.lane.b32.xlu0 %v570, 1
          %v592 = vpop.permute.xlu0 %591
          %593 = vrot.lane.b32.xlu0 %v572, 1
          %v594 = vpop.permute.xlu0 %593
          %595 = vrot.lane.b32.xlu0 %v573, 1
          %v596 = vpop.permute.xlu0 %595
          %597 = vrot.lane.b32.xlu0 %v575, 1
          %v598 = vpop.permute.xlu0 %597
          %599 = vrot.lane.b32.xlu0 %v577, 1
          %v600 = vpop.permute.xlu0 %599
          %601 = vrot.lane.b32.xlu0 %v578, 1
          %v602 = vpop.permute.xlu0 %601
          %603 = vrot.lane.b32.xlu0 %v580, 1
          %v604 = vpop.permute.xlu0 %603
          %605 = vrot.lane.b32.xlu0 %v582, 1
          %v606 = vpop.permute.xlu0 %605
          %v619 = vsub.f32 %v538, %v584
          %v620 = vsub.f32 %v539, %v586
          %v621 = vsub.f32 %v540, %v588
          %v622 = vsub.f32 %v541, %v590
          %v623 = vsub.f32 %v542, %v592
          %v624 = vsub.f32 %v543, %v594
          %v625 = vsub.f32 %v544, %v596
          %v626 = vsub.f32 %v545, %v598
          %v627 = vsub.f32 %v546, %v600
          %v628 = vsub.f32 %v547, %v602
          %v629 = vsub.f32 %v548, %v604
          %v630 = vsub.f32 %v549, %v606
          %v631 = vmul.f32 %v619, 0.5
          %v632 = vmul.f32 %v620, 0.5
          %v633 = vmul.f32 %v621, 0.5
          %v634 = vmul.f32 %v622, 0.5
          %v635 = vmul.f32 %v623, 0.5
          %v636 = vmul.f32 %v624, 0.5
          %v637 = vmul.f32 %v625, 0.5
          %v638 = vmul.f32 %v626, 0.5
          %v639 = vmul.f32 %v627, 0.5
          %v640 = vmul.f32 %v628, 0.5
          %v641 = vmul.f32 %v629, 0.5
          %v642 = vmul.f32 %v630, 0.5
          %v643 = vtanh.pop %v631
          %v644 = vtanh.pop %v632
          %v645 = vtanh.pop %v633
          %v646 = vtanh.pop %v634
          %v647 = vtanh.pop %v635
          %v648 = vtanh.pop %v636
          %v649 = vtanh.pop %v637
          %v650 = vtanh.pop %v638
          %v651 = vtanh.pop %v639
          %v652 = vtanh.pop %v640
          %v653 = vtanh.pop %v641
          %v654 = vtanh.pop %v642
          %v655 = vmul.f32 %v643, 0.5
          %v656 = vmul.f32 %v644, 0.5
          %v657 = vmul.f32 %v645, 0.5
          %v658 = vmul.f32 %v646, 0.5
          %v659 = vmul.f32 %v647, 0.5
          %v660 = vmul.f32 %v648, 0.5
          %v661 = vmul.f32 %v649, 0.5
          %v662 = vmul.f32 %v650, 0.5
          %v663 = vmul.f32 %v651, 0.5
          %v664 = vmul.f32 %v652, 0.5
          %v665 = vmul.f32 %v653, 0.5
          %v666 = vmul.f32 %v654, 0.5
          %v667 = vadd.f32 %v655, 0.5
          %v668 = vadd.f32 %v656, 0.5
          %v669 = vadd.f32 %v657, 0.5
          %v670 = vadd.f32 %v658, 0.5
          %v671 = vadd.f32 %v659, 0.5
          %v672 = vadd.f32 %v660, 0.5
          %v673 = vadd.f32 %v661, 0.5
          %v674 = vadd.f32 %v662, 0.5
          %v675 = vadd.f32 %v663, 0.5
          %v676 = vadd.f32 %v664, 0.5
          %v677 = vadd.f32 %v665, 0.5
          %v678 = vadd.f32 %v666, 0.5
          %v679 = vmul.f32 %v667, %v316
          %v680 = vmul.f32 %v668, %v317
          %v681 = vmul.f32 %v669, %v318
          %v682 = vmul.f32 %v670, %v319
          %v683 = vmul.f32 %v671, %v320
          %v684 = vmul.f32 %v672, %v321
          %v685 = vmul.f32 %v673, %v322
          %v686 = vmul.f32 %v674, %v323
          %v687 = vmul.f32 %v675, %v324
          %v688 = vmul.f32 %v676, %v325
          %v689 = vmul.f32 %v677, %v326
          %v690 = vmul.f32 %v678, %v327
          %v691 = vadd.f32 %v679, %v316
          %v692 = vadd.f32 %v680, %v317
          %v693 = vadd.f32 %v681, %v318
          %v694 = vadd.f32 %v682, %v319
          %v695 = vadd.f32 %v683, %v320
          %v696 = vadd.f32 %v684, %v321
          %v697 = vadd.f32 %v685, %v322
          %v698 = vadd.f32 %v686, %v323
          %v699 = vadd.f32 %v687, %v324
          %v700 = vadd.f32 %v688, %v325
          %v701 = vadd.f32 %v689, %v326
          %v702 = vadd.f32 %v690, %v327
          %715 = vrot.lane.b32.xlu0 %v691, 2
          %v716 = vpop.permute.xlu0 %715
          %717 = vrot.lane.b32.xlu0 %v692, 2
          %v718 = vpop.permute.xlu0 %717
          %719 = vrot.lane.b32.xlu0 %v693, 2
          %v720 = vpop.permute.xlu0 %719
          %721 = vrot.lane.b32.xlu0 %v694, 2
          %v722 = vpop.permute.xlu0 %721
          %723 = vrot.lane.b32.xlu0 %v695, 2
          %v724 = vpop.permute.xlu0 %723
          %725 = vrot.lane.b32.xlu0 %v696, 2
          %v726 = vpop.permute.xlu0 %725
          %727 = vrot.lane.b32.xlu0 %v697, 2
          %v728 = vpop.permute.xlu0 %727
          %729 = vrot.lane.b32.xlu0 %v698, 2
          %v730 = vpop.permute.xlu0 %729
          %731 = vrot.lane.b32.xlu0 %v699, 2
          %v732 = vpop.permute.xlu0 %731
          %733 = vrot.lane.b32.xlu0 %v700, 2
          %v734 = vpop.permute.xlu0 %733
          %735 = vrot.lane.b32.xlu0 %v701, 2
          %v736 = vpop.permute.xlu0 %735
          %737 = vrot.lane.b32.xlu0 %v702, 2
          %v738 = vpop.permute.xlu0 %737
          %v751 = vsub.f32 %v691, %v716
          %v752 = vsub.f32 %v692, %v718
          %v753 = vsub.f32 %v693, %v720
          %v754 = vsub.f32 %v694, %v722
          %v755 = vsub.f32 %v695, %v724
          %v756 = vsub.f32 %v696, %v726
          %v757 = vsub.f32 %v697, %v728
          %v758 = vsub.f32 %v698, %v730
          %v759 = vsub.f32 %v699, %v732
          %v760 = vsub.f32 %v700, %v734
          %v761 = vsub.f32 %v701, %v736
          %v762 = vsub.f32 %v702, %v738
          %v763 = vmul.f32 %v691, 2.0
          %v764 = vmul.f32 %v692, 2.0
          %v765 = vmul.f32 %v693, 2.0
          %v766 = vmul.f32 %v694, 2.0
          %v767 = vmul.f32 %v695, 2.0
          %v768 = vmul.f32 %v696, 2.0
          %v769 = vmul.f32 %v697, 2.0
          %v770 = vmul.f32 %v698, 2.0
          %v771 = vmul.f32 %v699, 2.0
          %v772 = vmul.f32 %v700, 2.0
          %v773 = vmul.f32 %v701, 2.0
          %v774 = vmul.f32 %v702, 2.0
          %787 = vrot.lane.b32.xlu0 %v763, 127
          %v788 = vpop.permute.xlu0 %787
          %789 = vrot.lane.b32.xlu0 %v764, 127
          %v790 = vpop.permute.xlu0 %789
          %791 = vrot.lane.b32.xlu0 %v765, 127
          %v792 = vpop.permute.xlu0 %791
          %793 = vrot.lane.b32.xlu0 %v766, 127
          %v794 = vpop.permute.xlu0 %793
          %795 = vrot.lane.b32.xlu0 %v767, 127
          %v796 = vpop.permute.xlu0 %795
          %797 = vrot.lane.b32.xlu0 %v768, 127
          %v798 = vpop.permute.xlu0 %797
          %799 = vrot.lane.b32.xlu0 %v769, 127
          %v800 = vpop.permute.xlu0 %799
          %801 = vrot.lane.b32.xlu0 %v770, 127
          %v802 = vpop.permute.xlu0 %801
          %803 = vrot.lane.b32.xlu0 %v771, 127
          %v804 = vpop.permute.xlu0 %803
          %805 = vrot.lane.b32.xlu0 %v772, 127
          %v806 = vpop.permute.xlu0 %805
          %807 = vrot.lane.b32.xlu0 %v773, 127
          %v808 = vpop.permute.xlu0 %807
          %809 = vrot.lane.b32.xlu0 %v774, 127
          %v810 = vpop.permute.xlu0 %809
          %v823 = vadd.f32 %v691, %v788
          %v824 = vadd.f32 %v692, %v790
          %v825 = vadd.f32 %v693, %v792
          %v826 = vadd.f32 %v694, %v794
          %v827 = vadd.f32 %v695, %v796
          %v828 = vadd.f32 %v696, %v798
          %v829 = vadd.f32 %v697, %v800
          %v830 = vadd.f32 %v698, %v802
          %v831 = vadd.f32 %v699, %v804
          %v832 = vadd.f32 %v700, %v806
          %v833 = vadd.f32 %v701, %v808
          %v834 = vadd.f32 %v702, %v810
          %835 = vrot.lane.b32.xlu0 %v691, 126
          %v836 = vpop.permute.xlu0 %835
          %837 = vrot.lane.b32.xlu0 %v692, 126
          %v838 = vpop.permute.xlu0 %837
          %839 = vrot.lane.b32.xlu0 %v693, 126
          %v840 = vpop.permute.xlu0 %839
          %841 = vrot.lane.b32.xlu0 %v694, 126
          %v842 = vpop.permute.xlu0 %841
          %843 = vrot.lane.b32.xlu0 %v695, 126
          %v844 = vpop.permute.xlu0 %843
          %845 = vrot.lane.b32.xlu0 %v696, 126
          %v846 = vpop.permute.xlu0 %845
          %847 = vrot.lane.b32.xlu0 %v697, 126
          %v848 = vpop.permute.xlu0 %847
          %849 = vrot.lane.b32.xlu0 %v698, 126
          %v850 = vpop.permute.xlu0 %849
          %851 = vrot.lane.b32.xlu0 %v699, 126
          %v852 = vpop.permute.xlu0 %851
          %853 = vrot.lane.b32.xlu0 %v700, 126
          %v854 = vpop.permute.xlu0 %853
          %855 = vrot.lane.b32.xlu0 %v701, 126
          %v856 = vpop.permute.xlu0 %855
          %857 = vrot.lane.b32.xlu0 %v702, 126
          %v858 = vpop.permute.xlu0 %857
          %v871 = vadd.f32 %v823, %v836
          %v872 = vadd.f32 %v824, %v838
          %v873 = vadd.f32 %v825, %v840
          %v874 = vadd.f32 %v826, %v842
          %v875 = vadd.f32 %v827, %v844
          %v876 = vadd.f32 %v828, %v846
          %v877 = vadd.f32 %v829, %v848
          %v878 = vadd.f32 %v830, %v850
          %v879 = vadd.f32 %v831, %v852
          %v880 = vadd.f32 %v832, %v854
          %v881 = vadd.f32 %v833, %v856
          %v882 = vadd.f32 %v834, %v858
          %v883 = vmul.f32 %v751, 2.0
          %v884 = vmul.f32 %v752, 2.0
          %v885 = vmul.f32 %v753, 2.0
          %v886 = vmul.f32 %v754, 2.0
          %v887 = vmul.f32 %v755, 2.0
          %v888 = vmul.f32 %v756, 2.0
          %v889 = vmul.f32 %v757, 2.0
          %v890 = vmul.f32 %v758, 2.0
          %v891 = vmul.f32 %v759, 2.0
          %v892 = vmul.f32 %v760, 2.0
          %v893 = vmul.f32 %v761, 2.0
          %v894 = vmul.f32 %v762, 2.0
          %v907 = vrot.slane %v883, 1
          %v908 = vrot.slane %v884, 1
          %v909 = vsel %vm448, %v907, %v908
          %v910 = vrot.slane %v885, 1
          %v911 = vsel %vm448, %v908, %v910
          %v912 = vrot.slane %v886, 1
          %v913 = vrot.slane %v887, 1
          %v914 = vsel %vm448, %v912, %v913
          %v915 = vrot.slane %v888, 1
          %v916 = vsel %vm448, %v913, %v915
          %v917 = vrot.slane %v889, 1
          %v918 = vrot.slane %v890, 1
          %v919 = vsel %vm448, %v917, %v918
          %v920 = vrot.slane %v891, 1
          %v921 = vsel %vm448, %v918, %v920
          %v922 = vrot.slane %v892, 1
          %v923 = vrot.slane %v893, 1
          %v924 = vsel %vm448, %v922, %v923
          %v925 = vrot.slane %v894, 1
          %v926 = vsel %vm448, %v923, %v925
          %v939 = vadd.f32 %v751, %v909
          %v940 = vadd.f32 %v752, %v911
          %v941 = vadd.f32 %v753, %v910
          %v942 = vadd.f32 %v754, %v914
          %v943 = vadd.f32 %v755, %v916
          %v944 = vadd.f32 %v756, %v915
          %v945 = vadd.f32 %v757, %v919
          %v946 = vadd.f32 %v758, %v921
          %v947 = vadd.f32 %v759, %v920
          %v948 = vadd.f32 %v760, %v924
          %v949 = vadd.f32 %v761, %v926
          %v950 = vadd.f32 %v762, %v925
          %v963 = vrot.slane %v751, 2
          %v964 = vrot.slane %v752, 2
          %v965 = vsel %vm493, %v963, %v964
          %v966 = vrot.slane %v753, 2
          %v967 = vsel %vm493, %v964, %v966
          %v968 = vrot.slane %v754, 2
          %v969 = vrot.slane %v755, 2
          %v970 = vsel %vm493, %v968, %v969
          %v971 = vrot.slane %v756, 2
          %v972 = vsel %vm493, %v969, %v971
          %v973 = vrot.slane %v757, 2
          %v974 = vrot.slane %v758, 2
          %v975 = vsel %vm493, %v973, %v974
          %v976 = vrot.slane %v759, 2
          %v977 = vsel %vm493, %v974, %v976
          %v978 = vrot.slane %v760, 2
          %v979 = vrot.slane %v761, 2
          %v980 = vsel %vm493, %v978, %v979
          %v981 = vrot.slane %v762, 2
          %v982 = vsel %vm493, %v979, %v981
          %v995 = vadd.f32 %v939, %v965
          %v996 = vadd.f32 %v940, %v967
          %v997 = vadd.f32 %v941, %v966
          %v998 = vadd.f32 %v942, %v970
          %v999 = vadd.f32 %v943, %v972
          %v1000 = vadd.f32 %v944, %v971
          %v1001 = vadd.f32 %v945, %v975
          %v1002 = vadd.f32 %v946, %v977
          %v1003 = vadd.f32 %v947, %v976
          %v1004 = vadd.f32 %v948, %v980
          %v1005 = vadd.f32 %v949, %v982
          %v1006 = vadd.f32 %v950, %v981
          %vm1019 = vcmask 1041408
          %v1020 = vrot.slane %v871, 6
          %v1021 = vrot.slane %v872, 6
          %v1022 = vsel %vm1019, %v1020, %v1021
          %v1023 = vrot.slane %v873, 6
          %v1024 = vsel %vm1019, %v1021, %v1023
          %v1025 = vrot.slane %v874, 6
          %v1026 = vrot.slane %v875, 6
          %v1027 = vsel %vm1019, %v1025, %v1026
          %v1028 = vrot.slane %v876, 6
          %v1029 = vsel %vm1019, %v1026, %v1028
          %v1030 = vrot.slane %v877, 6
          %v1031 = vrot.slane %v878, 6
          %v1032 = vsel %vm1019, %v1030, %v1031
          %v1033 = vrot.slane %v879, 6
          %v1034 = vsel %vm1019, %v1031, %v1033
          %v1035 = vrot.slane %v880, 6
          %v1036 = vrot.slane %v881, 6
          %v1037 = vsel %vm1019, %v1035, %v1036
          %v1038 = vrot.slane %v882, 6
          %v1039 = vsel %vm1019, %v1036, %v1038
          %v1052 = vsub.f32 %v871, %v1020
          %v1053 = vsub.f32 %v872, %v1022
          %v1054 = vsub.f32 %v873, %v1024
          %v1055 = vsub.f32 %v874, %v1025
          %v1056 = vsub.f32 %v875, %v1027
          %v1057 = vsub.f32 %v876, %v1029
          %v1058 = vsub.f32 %v877, %v1030
          %v1059 = vsub.f32 %v878, %v1032
          %v1060 = vsub.f32 %v879, %v1034
          %v1061 = vsub.f32 %v880, %v1035
          %v1062 = vsub.f32 %v881, %v1037
          %v1063 = vsub.f32 %v882, %v1039
          %v1064 = vmul.f32 %v995, %v995
          %v1065 = vmul.f32 %v996, %v996
          %v1066 = vmul.f32 %v997, %v997
          %v1067 = vmul.f32 %v998, %v998
          %v1068 = vmul.f32 %v999, %v999
          %v1069 = vmul.f32 %v1000, %v1000
          %v1070 = vmul.f32 %v1001, %v1001
          %v1071 = vmul.f32 %v1002, %v1002
          %v1072 = vmul.f32 %v1003, %v1003
          %v1073 = vmul.f32 %v1004, %v1004
          %v1074 = vmul.f32 %v1005, %v1005
          %v1075 = vmul.f32 %v1006, %v1006
          %v1076 = vmul.f32 %v1052, %v1052
          %v1077 = vmul.f32 %v1053, %v1053
          %v1078 = vmul.f32 %v1054, %v1054
          %v1079 = vmul.f32 %v1055, %v1055
          %v1080 = vmul.f32 %v1056, %v1056
          %v1081 = vmul.f32 %v1057, %v1057
          %v1082 = vmul.f32 %v1058, %v1058
          %v1083 = vmul.f32 %v1059, %v1059
          %v1084 = vmul.f32 %v1060, %v1060
          %v1085 = vmul.f32 %v1061, %v1061
          %v1086 = vmul.f32 %v1062, %v1062
          %v1087 = vmul.f32 %v1063, %v1063
          %v1100 = vrot.slane %v1076, 2
          %v1101 = vrot.slane %v1077, 2
          %v1102 = vsel %vm493, %v1100, %v1101
          %v1103 = vrot.slane %v1078, 2
          %v1104 = vsel %vm493, %v1101, %v1103
          %v1105 = vrot.slane %v1079, 2
          %v1106 = vrot.slane %v1080, 2
          %v1107 = vsel %vm493, %v1105, %v1106
          %v1108 = vrot.slane %v1081, 2
          %v1109 = vsel %vm493, %v1106, %v1108
          %v1110 = vrot.slane %v1082, 2
          %v1111 = vrot.slane %v1083, 2
          %v1112 = vsel %vm493, %v1110, %v1111
          %v1113 = vrot.slane %v1084, 2
          %v1114 = vsel %vm493, %v1111, %v1113
          %v1115 = vrot.slane %v1085, 2
          %v1116 = vrot.slane %v1086, 2
          %v1117 = vsel %vm493, %v1115, %v1116
          %v1118 = vrot.slane %v1087, 2
          %v1119 = vsel %vm493, %v1116, %v1118
          %1120 = vrot.lane.b32.xlu0 %v1102, 2
          %v1121 = vpop.permute.xlu0 %1120
          %1122 = vrot.lane.b32.xlu0 %v1104, 2
          %v1123 = vpop.permute.xlu0 %1122
          %1124 = vrot.lane.b32.xlu0 %v1103, 2
          %v1125 = vpop.permute.xlu0 %1124
          %1126 = vrot.lane.b32.xlu0 %v1107, 2
          %v1127 = vpop.permute.xlu0 %1126
          %1128 = vrot.lane.b32.xlu0 %v1109, 2
          %v1129 = vpop.permute.xlu0 %1128
          %1130 = vrot.lane.b32.xlu0 %v1108, 2
          %v1131 = vpop.permute.xlu0 %1130
          %1132 = vrot.lane.b32.xlu0 %v1112, 2
          %v1133 = vpop.permute.xlu0 %1132
          %1134 = vrot.lane.b32.xlu0 %v1114, 2
          %v1135 = vpop.permute.xlu0 %1134
          %1136 = vrot.lane.b32.xlu0 %v1113, 2
          %v1137 = vpop.permute.xlu0 %1136
          %1138 = vrot.lane.b32.xlu0 %v1117, 2
          %v1139 = vpop.permute.xlu0 %1138
          %1140 = vrot.lane.b32.xlu0 %v1119, 2
          %v1141 = vpop.permute.xlu0 %1140
          %1142 = vrot.lane.b32.xlu0 %v1118, 2
          %v1143 = vpop.permute.xlu0 %1142
          %v1156 = vadd.f32 %v1064, %v1121
          %v1157 = vadd.f32 %v1065, %v1123
          %v1158 = vadd.f32 %v1066, %v1125
          %v1159 = vadd.f32 %v1067, %v1127
          %v1160 = vadd.f32 %v1068, %v1129
          %v1161 = vadd.f32 %v1069, %v1131
          %v1162 = vadd.f32 %v1070, %v1133
          %v1163 = vadd.f32 %v1071, %v1135
          %v1164 = vadd.f32 %v1072, %v1137
          %v1165 = vadd.f32 %v1073, %v1139
          %v1166 = vadd.f32 %v1074, %v1141
          %v1167 = vadd.f32 %v1075, %v1143
          %v1168 = vrsqrt.pop %v1156
          %v1169 = vmul.f32 %v1156, %v1168
          %vm1170 = vcmp.eq.f32.partialorder %v1156, inf
          %v1171 = vsel %vm1170, %v1156, %v1169
          %vm1172 = vcmp.eq.f32.partialorder %v1156, 0.0
          %v1173 = vand.u32 %v1156, 2147483648
          %v1174 = vsel %vm1172, %v1173, %v1171
          %v1175 = vrsqrt.pop %v1157
          %v1176 = vmul.f32 %v1157, %v1175
          %vm1177 = vcmp.eq.f32.partialorder %v1157, inf
          %v1178 = vsel %vm1177, %v1157, %v1176
          %vm1179 = vcmp.eq.f32.partialorder %v1157, 0.0
          %v1180 = vand.u32 %v1157, 2147483648
          %v1181 = vsel %vm1179, %v1180, %v1178
          %v1182 = vrsqrt.pop %v1158
          %v1183 = vmul.f32 %v1158, %v1182
          %vm1184 = vcmp.eq.f32.partialorder %v1158, inf
          %v1185 = vsel %vm1184, %v1158, %v1183
          %vm1186 = vcmp.eq.f32.partialorder %v1158, 0.0
          %v1187 = vand.u32 %v1158, 2147483648
          %v1188 = vsel %vm1186, %v1187, %v1185
          %v1189 = vrsqrt.pop %v1159
          %v1190 = vmul.f32 %v1159, %v1189
          %vm1191 = vcmp.eq.f32.partialorder %v1159, inf
          %v1192 = vsel %vm1191, %v1159, %v1190
          %vm1193 = vcmp.eq.f32.partialorder %v1159, 0.0
          %v1194 = vand.u32 %v1159, 2147483648
          %v1195 = vsel %vm1193, %v1194, %v1192
          %v1196 = vrsqrt.pop %v1160
          %v1197 = vmul.f32 %v1160, %v1196
          %vm1198 = vcmp.eq.f32.partialorder %v1160, inf
          %v1199 = vsel %vm1198, %v1160, %v1197
          %vm1200 = vcmp.eq.f32.partialorder %v1160, 0.0
          %v1201 = vand.u32 %v1160, 2147483648
          %v1202 = vsel %vm1200, %v1201, %v1199
          %v1203 = vrsqrt.pop %v1161
          %v1204 = vmul.f32 %v1161, %v1203
          %vm1205 = vcmp.eq.f32.partialorder %v1161, inf
          %v1206 = vsel %vm1205, %v1161, %v1204
          %vm1207 = vcmp.eq.f32.partialorder %v1161, 0.0
          %v1208 = vand.u32 %v1161, 2147483648
          %v1209 = vsel %vm1207, %v1208, %v1206
          %v1210 = vrsqrt.pop %v1162
          %v1211 = vmul.f32 %v1162, %v1210
          %vm1212 = vcmp.eq.f32.partialorder %v1162, inf
          %v1213 = vsel %vm1212, %v1162, %v1211
          %vm1214 = vcmp.eq.f32.partialorder %v1162, 0.0
          %v1215 = vand.u32 %v1162, 2147483648
          %v1216 = vsel %vm1214, %v1215, %v1213
          %v1217 = vrsqrt.pop %v1163
          %v1218 = vmul.f32 %v1163, %v1217
          %vm1219 = vcmp.eq.f32.partialorder %v1163, inf
          %v1220 = vsel %vm1219, %v1163, %v1218
          %vm1221 = vcmp.eq.f32.partialorder %v1163, 0.0
          %v1222 = vand.u32 %v1163, 2147483648
          %v1223 = vsel %vm1221, %v1222, %v1220
          %v1224 = vrsqrt.pop %v1164
          %v1225 = vmul.f32 %v1164, %v1224
          %vm1226 = vcmp.eq.f32.partialorder %v1164, inf
          %v1227 = vsel %vm1226, %v1164, %v1225
          %vm1228 = vcmp.eq.f32.partialorder %v1164, 0.0
          %v1229 = vand.u32 %v1164, 2147483648
          %v1230 = vsel %vm1228, %v1229, %v1227
          %v1231 = vrsqrt.pop %v1165
          %v1232 = vmul.f32 %v1165, %v1231
          %vm1233 = vcmp.eq.f32.partialorder %v1165, inf
          %v1234 = vsel %vm1233, %v1165, %v1232
          %vm1235 = vcmp.eq.f32.partialorder %v1165, 0.0
          %v1236 = vand.u32 %v1165, 2147483648
          %v1237 = vsel %vm1235, %v1236, %v1234
          %v1238 = vrsqrt.pop %v1166
          %v1239 = vmul.f32 %v1166, %v1238
          %vm1240 = vcmp.eq.f32.partialorder %v1166, inf
          %v1241 = vsel %vm1240, %v1166, %v1239
          %vm1242 = vcmp.eq.f32.partialorder %v1166, 0.0
          %v1243 = vand.u32 %v1166, 2147483648
          %v1244 = vsel %vm1242, %v1243, %v1241
          %v1245 = vrsqrt.pop %v1167
          %v1246 = vmul.f32 %v1167, %v1245
          %vm1247 = vcmp.eq.f32.partialorder %v1167, inf
          %v1248 = vsel %vm1247, %v1167, %v1246
          %vm1249 = vcmp.eq.f32.partialorder %v1167, 0.0
          %v1250 = vand.u32 %v1167, 2147483648
          %v1251 = vsel %vm1249, %v1250, %v1248
          %1264 = vrot.lane.b32.xlu0 %v1174, 125
          %v1265 = vpop.permute.xlu0 %1264
          %1266 = vrot.lane.b32.xlu0 %v1181, 125
          %v1267 = vpop.permute.xlu0 %1266
          %1268 = vrot.lane.b32.xlu0 %v1188, 125
          %v1269 = vpop.permute.xlu0 %1268
          %1270 = vrot.lane.b32.xlu0 %v1195, 125
          %v1271 = vpop.permute.xlu0 %1270
          %1272 = vrot.lane.b32.xlu0 %v1202, 125
          %v1273 = vpop.permute.xlu0 %1272
          %1274 = vrot.lane.b32.xlu0 %v1209, 125
          %v1275 = vpop.permute.xlu0 %1274
          %1276 = vrot.lane.b32.xlu0 %v1216, 125
          %v1277 = vpop.permute.xlu0 %1276
          %1278 = vrot.lane.b32.xlu0 %v1223, 125
          %v1279 = vpop.permute.xlu0 %1278
          %1280 = vrot.lane.b32.xlu0 %v1230, 125
          %v1281 = vpop.permute.xlu0 %1280
          %1282 = vrot.lane.b32.xlu0 %v1237, 125
          %v1283 = vpop.permute.xlu0 %1282
          %1284 = vrot.lane.b32.xlu0 %v1244, 125
          %v1285 = vpop.permute.xlu0 %1284
          %1286 = vrot.lane.b32.xlu0 %v1251, 125
          %v1287 = vpop.permute.xlu0 %1286
          %s1300 = smul.u32 %s25, 64
          %s1301 = scalar_lea.vmem [#allocation3], %s1300
          %vm1302 = vcmask 130049
          %1303 = vst.msk [vmem:[%s1301 - $0x1] sm:$0xfe] %vm1302, %v1265
          %vm1304 = vcmask 130048
          %1305 = vst.msk [vmem:[%s1301 + $0x7] sm:$0xff] %vm1304, %v1267
          %vm1306 = vcmask 122880
          %1307 = vst.msk [vmem:[%s1301 + $0xf] sm:$0x1] %vm1306, %v1269
          %1308 = vst.msk [vmem:[%s1301 + $0xf] sm:$0xfe] %vm1302, %v1271
          %1309 = vst.msk [vmem:[%s1301 + $0x17] sm:$0xff] %vm1304, %v1273
          %1310 = vst.msk [vmem:[%s1301 + $0x1f] sm:$0x1] %vm1306, %v1275
          %1311 = vst.msk [vmem:[%s1301 + $0x1f] sm:$0xfe] %vm1302, %v1277
          %1312 = vst.msk [vmem:[%s1301 + $0x27] sm:$0xff] %vm1304, %v1279
          %1313 = vst.msk [vmem:[%s1301 + $0x2f] sm:$0x1] %vm1306, %v1281
          %1314 = vst.msk [vmem:[%s1301 + $0x2f] sm:$0xfe] %vm1302, %v1283
          %1315 = vst.msk [vmem:[%s1301 + $0x37] sm:$0xff] %vm1304, %v1285
          %1316 = vst.msk [vmem:[%s1301 + $0x3f] sm:$0x1] %vm1306, %v1287
          %v1317 = vld [vmem:[#allocation4] sm:$0x1]
          %v1318 = vld [vmem:[#allocation4 + $0x1] sm:$0x1]
          %v1319 = vld [vmem:[#allocation4 + $0x2] sm:$0x1]
          %v1320 = vld [vmem:[#allocation4 + $0x3] sm:$0x1]
          %v1321 = vsel %vm1302, %v1265, 0.0
          %1322 = vadd.xlane.f32.xlu0 %v1321
          %v1323 = vpop.xlane.xlu0 %1322
          %v1324 = vsel %vm1304, %v1267, 0.0
          %1325 = vadd.xlane.f32.xlu0 %v1324
          %v1326 = vpop.xlane.xlu0 %1325
          %v1327 = vsel %vm1306, %v1269, 0.0
          %1328 = vadd.xlane.f32.xlu0 %v1327
          %v1329 = vpop.xlane.xlu0 %1328
          %v1330 = vsel %vm1302, %v1271, 0.0
          %1331 = vadd.xlane.f32.xlu0 %v1330
          %v1332 = vpop.xlane.xlu0 %1331
          %v1333 = vsel %vm1304, %v1273, 0.0
          %1334 = vadd.xlane.f32.xlu0 %v1333
          %v1335 = vpop.xlane.xlu0 %1334
          %v1336 = vsel %vm1306, %v1275, 0.0
          %1337 = vadd.xlane.f32.xlu0 %v1336
          %v1338 = vpop.xlane.xlu0 %1337
          %v1339 = vsel %vm1302, %v1277, 0.0
          %1340 = vadd.xlane.f32.xlu0 %v1339
          %v1341 = vpop.xlane.xlu0 %1340
          %v1342 = vsel %vm1304, %v1279, 0.0
          %1343 = vadd.xlane.f32.xlu0 %v1342
          %v1344 = vpop.xlane.xlu0 %1343
          %v1345 = vsel %vm1306, %v1281, 0.0
          %1346 = vadd.xlane.f32.xlu0 %v1345
          %v1347 = vpop.xlane.xlu0 %1346
          %v1348 = vsel %vm1302, %v1283, 0.0
          %1349 = vadd.xlane.f32.xlu0 %v1348
          %v1350 = vpop.xlane.xlu0 %1349
          %v1351 = vsel %vm1304, %v1285, 0.0
          %1352 = vadd.xlane.f32.xlu0 %v1351
          %v1353 = vpop.xlane.xlu0 %1352
          %v1354 = vsel %vm1306, %v1287, 0.0
          %1355 = vadd.xlane.f32.xlu0 %v1354
          %v1356 = vpop.xlane.xlu0 %1355
          %v1369 = vrot.slane %v1323, 1
          %v1370 = vrot.slane %v1326, 1
          %v1371 = vsel %vm448, %v1369, %v1370
          %v1372 = vrot.slane %v1329, 1
          %v1373 = vsel %vm448, %v1370, %v1372
          %v1374 = vrot.slane %v1332, 1
          %v1375 = vrot.slane %v1335, 1
          %v1376 = vsel %vm448, %v1374, %v1375
          %v1377 = vrot.slane %v1338, 1
          %v1378 = vsel %vm448, %v1375, %v1377
          %v1379 = vrot.slane %v1341, 1
          %v1380 = vrot.slane %v1344, 1
          %v1381 = vsel %vm448, %v1379, %v1380
          %v1382 = vrot.slane %v1347, 1
          %v1383 = vsel %vm448, %v1380, %v1382
          %v1384 = vrot.slane %v1350, 1
          %v1385 = vrot.slane %v1353, 1
          %v1386 = vsel %vm448, %v1384, %v1385
          %v1387 = vrot.slane %v1356, 1
          %v1388 = vsel %vm448, %v1385, %v1387
          %v1397 = vadd.f32 %v1371, %v1373
          %v1398 = vrot.slane %v1397, 4
          %v1399 = vadd.f32 %v1397, %v1398
          %v1400 = vrot.slane %v1399, 2
          %v1401 = vadd.f32 %v1399, %v1400
          %v1402 = vrot.slane %v1401, 1
          %v1403 = vadd.f32 %v1401, %v1402
          %v1404 = vadd.f32 %v1376, %v1378
          %v1405 = vrot.slane %v1404, 4
          %v1406 = vadd.f32 %v1404, %v1405
          %v1407 = vrot.slane %v1406, 2
          %v1408 = vadd.f32 %v1406, %v1407
          %v1409 = vrot.slane %v1408, 1
          %v1410 = vadd.f32 %v1408, %v1409
          %v1411 = vadd.f32 %v1381, %v1383
          %v1412 = vrot.slane %v1411, 4
          %v1413 = vadd.f32 %v1411, %v1412
          %v1414 = vrot.slane %v1413, 2
          %v1415 = vadd.f32 %v1413, %v1414
          %v1416 = vrot.slane %v1415, 1
          %v1417 = vadd.f32 %v1415, %v1416
          %v1418 = vadd.f32 %v1386, %v1388
          %v1419 = vrot.slane %v1418, 4
          %v1420 = vadd.f32 %v1418, %v1419
          %v1421 = vrot.slane %v1420, 2
          %v1422 = vadd.f32 %v1420, %v1421
          %v1423 = vrot.slane %v1422, 1
          %v1424 = vadd.f32 %v1422, %v1423
          %v1425 = vadd.f32 %v1317, %v1403
          %v1426 = vadd.f32 %v1318, %v1410
          %v1427 = vadd.f32 %v1319, %v1417
          %v1428 = vadd.f32 %v1320, %v1424
          %vm1429 = vcmask 0
          %1430 = vst.msk [vmem:[#allocation4] sm:$0x1] %vm1429, %v1425
          %1431 = vst.msk [vmem:[#allocation4 + $0x1] sm:$0x1] %vm1429, %v1426
          %1432 = vst.msk [vmem:[#allocation4 + $0x2] sm:$0x1] %vm1429, %v1427
          %1433 = vst.msk [vmem:[#allocation4 + $0x3] sm:$0x1] %vm1429, %v1428
          %v1434 = vld [vmem:[#allocation5] sm:$0x1]
          %v1435 = vld [vmem:[#allocation5 + $0x1] sm:$0x1]
          %v1436 = vld [vmem:[#allocation5 + $0x2] sm:$0x1]
          %v1437 = vld [vmem:[#allocation5 + $0x3] sm:$0x1]
          %1450 = vrot.lane.b32.xlu0 %v1156, 125
          %v1451 = vpop.permute.xlu0 %1450
          %1452 = vrot.lane.b32.xlu0 %v1157, 125
          %v1453 = vpop.permute.xlu0 %1452
          %1454 = vrot.lane.b32.xlu0 %v1158, 125
          %v1455 = vpop.permute.xlu0 %1454
          %1456 = vrot.lane.b32.xlu0 %v1159, 125
          %v1457 = vpop.permute.xlu0 %1456
          %1458 = vrot.lane.b32.xlu0 %v1160, 125
          %v1459 = vpop.permute.xlu0 %1458
          %1460 = vrot.lane.b32.xlu0 %v1161, 125
          %v1461 = vpop.permute.xlu0 %1460
          %1462 = vrot.lane.b32.xlu0 %v1162, 125
          %v1463 = vpop.permute.xlu0 %1462
          %1464 = vrot.lane.b32.xlu0 %v1163, 125
          %v1465 = vpop.permute.xlu0 %1464
          %1466 = vrot.lane.b32.xlu0 %v1164, 125
          %v1467 = vpop.permute.xlu0 %1466
          %1468 = vrot.lane.b32.xlu0 %v1165, 125
          %v1469 = vpop.permute.xlu0 %1468
          %1470 = vrot.lane.b32.xlu0 %v1166, 125
          %v1471 = vpop.permute.xlu0 %1470
          %1472 = vrot.lane.b32.xlu0 %v1167, 125
          %v1473 = vpop.permute.xlu0 %1472
          %v1486 = vsel %vm1302, %v1451, 0.0
          %1487 = vadd.xlane.f32.xlu0 %v1486
          %v1488 = vpop.xlane.xlu0 %1487
          %v1489 = vsel %vm1304, %v1453, 0.0
          %1490 = vadd.xlane.f32.xlu0 %v1489
          %v1491 = vpop.xlane.xlu0 %1490
          %v1492 = vsel %vm1306, %v1455, 0.0
          %1493 = vadd.xlane.f32.xlu0 %v1492
          %v1494 = vpop.xlane.xlu0 %1493
          %v1495 = vsel %vm1302, %v1457, 0.0
          %1496 = vadd.xlane.f32.xlu0 %v1495
          %v1497 = vpop.xlane.xlu0 %1496
          %v1498 = vsel %vm1304, %v1459, 0.0
          %1499 = vadd.xlane.f32.xlu0 %v1498
          %v1500 = vpop.xlane.xlu0 %1499
          %v1501 = vsel %vm1306, %v1461, 0.0
          %1502 = vadd.xlane.f32.xlu0 %v1501
          %v1503 = vpop.xlane.xlu0 %1502
          %v1504 = vsel %vm1302, %v1463, 0.0
          %1505 = vadd.xlane.f32.xlu0 %v1504
          %v1506 = vpop.xlane.xlu0 %1505
          %v1507 = vsel %vm1304, %v1465, 0.0
          %1508 = vadd.xlane.f32.xlu0 %v1507
          %v1509 = vpop.xlane.xlu0 %1508
          %v1510 = vsel %vm1306, %v1467, 0.0
          %1511 = vadd.xlane.f32.xlu0 %v1510
          %v1512 = vpop.xlane.xlu0 %1511
          %v1513 = vsel %vm1302, %v1469, 0.0
          %1514 = vadd.xlane.f32.xlu0 %v1513
          %v1515 = vpop.xlane.xlu0 %1514
          %v1516 = vsel %vm1304, %v1471, 0.0
          %1517 = vadd.xlane.f32.xlu0 %v1516
          %v1518 = vpop.xlane.xlu0 %1517
          %v1519 = vsel %vm1306, %v1473, 0.0
          %1520 = vadd.xlane.f32.xlu0 %v1519
          %v1521 = vpop.xlane.xlu0 %1520
          %v1534 = vrot.slane %v1488, 1
          %v1535 = vrot.slane %v1491, 1
          %v1536 = vsel %vm448, %v1534, %v1535
          %v1537 = vrot.slane %v1494, 1
          %v1538 = vsel %vm448, %v1535, %v1537
          %v1539 = vrot.slane %v1497, 1
          %v1540 = vrot.slane %v1500, 1
          %v1541 = vsel %vm448, %v1539, %v1540
          %v1542 = vrot.slane %v1503, 1
          %v1543 = vsel %vm448, %v1540, %v1542
          %v1544 = vrot.slane %v1506, 1
          %v1545 = vrot.slane %v1509, 1
          %v1546 = vsel %vm448, %v1544, %v1545
          %v1547 = vrot.slane %v1512, 1
          %v1548 = vsel %vm448, %v1545, %v1547
          %v1549 = vrot.slane %v1515, 1
          %v1550 = vrot.slane %v1518, 1
          %v1551 = vsel %vm448, %v1549, %v1550
          %v1552 = vrot.slane %v1521, 1
          %v1553 = vsel %vm448, %v1550, %v1552
          %v1562 = vadd.f32 %v1536, %v1538
          %v1563 = vrot.slane %v1562, 4
          %v1564 = vadd.f32 %v1562, %v1563
          %v1565 = vrot.slane %v1564, 2
          %v1566 = vadd.f32 %v1564, %v1565
          %v1567 = vrot.slane %v1566, 1
          %v1568 = vadd.f32 %v1566, %v1567
          %v1569 = vadd.f32 %v1541, %v1543
          %v1570 = vrot.slane %v1569, 4
          %v1571 = vadd.f32 %v1569, %v1570
          %v1572 = vrot.slane %v1571, 2
          %v1573 = vadd.f32 %v1571, %v1572
          %v1574 = vrot.slane %v1573, 1
          %v1575 = vadd.f32 %v1573, %v1574
          %v1576 = vadd.f32 %v1546, %v1548
          %v1577 = vrot.slane %v1576, 4
          %v1578 = vadd.f32 %v1576, %v1577
          %v1579 = vrot.slane %v1578, 2
          %v1580 = vadd.f32 %v1578, %v1579
          %v1581 = vrot.slane %v1580, 1
          %v1582 = vadd.f32 %v1580, %v1581
          %v1583 = vadd.f32 %v1551, %v1553
          %v1584 = vrot.slane %v1583, 4
          %v1585 = vadd.f32 %v1583, %v1584
          %v1586 = vrot.slane %v1585, 2
          %v1587 = vadd.f32 %v1585, %v1586
          %v1588 = vrot.slane %v1587, 1
          %v1589 = vadd.f32 %v1587, %v1588
          %v1590 = vadd.f32 %v1434, %v1568
          %v1591 = vadd.f32 %v1435, %v1575
          %v1592 = vadd.f32 %v1436, %v1582
          %v1593 = vadd.f32 %v1437, %v1589
          %1594 = vst.msk [vmem:[#allocation5] sm:$0x1] %vm1429, %v1590
          %1595 = vst.msk [vmem:[#allocation5 + $0x1] sm:$0x1] %vm1429, %v1591
          %1596 = vst.msk [vmem:[#allocation5 + $0x2] sm:$0x1] %vm1429, %v1592
          %1597 = vst.msk [vmem:[#allocation5 + $0x3] sm:$0x1] %vm1429, %v1593
        $region44: #{efe_forward.1} parent=31 // pred_fallthru
          _
        %p1598 = scmp.eq.s32.totalorder %s24, 1
        // Predicated region
        $region45: #{efe_forward.1} parent=31 // pred_check
          %p1599 = pneg %p1598
        $region46: #{efe_forward.1} parent=31 // pred_check_branch
          %1601 = sbr.rel (%p1599) target = $region48
        $region47: #{efe_forward.1} parent=31 // pred_region
          %v1602 = vld [vmem:[#allocation4] sm:$0x1]
          %v1603 = vld [vmem:[#allocation4 + $0x1] sm:$0x1]
          %v1604 = vld [vmem:[#allocation4 + $0x2] sm:$0x1]
          %v1605 = vld [vmem:[#allocation4 + $0x3] sm:$0x1]
          %v1606 = vrcp.pop 512.0
          %v1607 = vmul.f32 %v1602, %v1606
          %v1608 = vmul.f32 %v1603, %v1606
          %v1609 = vmul.f32 %v1604, %v1606
          %v1610 = vmul.f32 %v1605, %v1606
          %v1611 = vld [vmem:[#allocation5] sm:$0x1]
          %v1612 = vld [vmem:[#allocation5 + $0x1] sm:$0x1]
          %v1613 = vld [vmem:[#allocation5 + $0x2] sm:$0x1]
          %v1614 = vld [vmem:[#allocation5 + $0x3] sm:$0x1]
          %v1615 = vmul.f32 %v1611, %v1606
          %v1616 = vmul.f32 %v1612, %v1606
          %v1617 = vmul.f32 %v1613, %v1606
          %v1618 = vmul.f32 %v1614, %v1606
          %v1619 = vmul.f32 %v1607, %v1607
          %v1620 = vmul.f32 %v1608, %v1608
          %v1621 = vmul.f32 %v1609, %v1609
          %v1622 = vmul.f32 %v1610, %v1610
          %v1623 = vsub.f32 %v1615, %v1619
          %v1624 = vsub.f32 %v1616, %v1620
          %v1625 = vsub.f32 %v1617, %v1621
          %v1626 = vsub.f32 %v1618, %v1622
          %v1627 = vmax.f32 %v1623, 0.0
          %v1628 = vmax.f32 %v1624, 0.0
          %v1629 = vmax.f32 %v1625, 0.0
          %v1630 = vmax.f32 %v1626, 0.0
          %v1631 = vld [vmem:[%s1] sm:$0x1]
          %v1632 = vld [vmem:[%s1 + $0x1] sm:$0x1]
          %v1633 = vld [vmem:[%s1 + $0x2] sm:$0x1]
          %v1634 = vld [vmem:[%s1 + $0x3] sm:$0x1]
          %v1635 = vadd.f32 %v1627, 1e-05
          %v1636 = vadd.f32 %v1628, 1e-05
          %v1637 = vadd.f32 %v1629, 1e-05
          %v1638 = vadd.f32 %v1630, 1e-05
          %v1639 = vrsqrt.pop %v1635
          %v1640 = vrsqrt.pop %v1636
          %v1641 = vrsqrt.pop %v1637
          %v1642 = vrsqrt.pop %v1638
          %v1643 = vmul.f32 %v1631, %v1639
          %v1644 = vmul.f32 %v1632, %v1640
          %v1645 = vmul.f32 %v1633, %v1641
          %v1646 = vmul.f32 %v1634, %v1642
          %v1647 = vld [vmem:[%s2] sm:$0x1]
          %v1648 = vld [vmem:[%s2 + $0x1] sm:$0x1]
          %v1649 = vld [vmem:[%s2 + $0x2] sm:$0x1]
          %v1650 = vld [vmem:[%s2 + $0x3] sm:$0x1]
          %v1651 = vmul.f32 %v1607, %v1643
          %v1652 = vmul.f32 %v1608, %v1644
          %v1653 = vmul.f32 %v1609, %v1645
          %v1654 = vmul.f32 %v1610, %v1646
          %v1655 = vsub.f32 %v1647, %v1651
          %v1656 = vsub.f32 %v1648, %v1652
          %v1657 = vsub.f32 %v1649, %v1653
          %v1658 = vsub.f32 %v1650, %v1654
          %s1659 = smul.u32 %s25, 64
          %s1660 = scalar_lea.vmem [#allocation3], %s1659
          %v1661 = vld [vmem:[%s1660] sm:$0xff]
          %v1662 = vld [vmem:[%s1660 + $0x8] sm:$0xff]
          %v1663 = vld [vmem:[%s1660 + $0x10] sm:$0xff]
          %v1664 = vld [vmem:[%s1660 + $0x18] sm:$0xff]
          %v1665 = vld [vmem:[%s1660 + $0x20] sm:$0xff]
          %v1666 = vld [vmem:[%s1660 + $0x28] sm:$0xff]
          %v1667 = vld [vmem:[%s1660 + $0x30] sm:$0xff]
          %v1668 = vld [vmem:[%s1660 + $0x38] sm:$0xff]
          %v1673 = vlaneseq
          %v1674 = vshrl.u32 %v1673, 7
          %v1675 = vsub.s32 0, %v1674
          %v1676 = vrot.slane %v1643, %v1675
          %v1677 = vlaneseq
          %v1678 = vshrl.u32 %v1677, 7
          %v1679 = vsub.s32 0, %v1678
          %v1680 = vrot.slane %v1644, %v1679
          %v1681 = vlaneseq
          %v1682 = vshrl.u32 %v1681, 7
          %v1683 = vsub.s32 0, %v1682
          %v1684 = vrot.slane %v1645, %v1683
          %v1685 = vlaneseq
          %v1686 = vshrl.u32 %v1685, 7
          %v1687 = vsub.s32 0, %v1686
          %v1688 = vrot.slane %v1646, %v1687
          %1689 = vset.pattern.permute.xlu0 0
          %1690 = vperm.xlu0 %1689, %v1676
          %v1691 = vpop.permute.xlu0 %1690
          %1693 = vset.pattern.permute.xlu0 0
          %1694 = vperm.xlu0 %1693, %v1680
          %v1695 = vpop.permute.xlu0 %1694
          %1697 = vset.pattern.permute.xlu0 0
          %1698 = vperm.xlu0 %1697, %v1684
          %v1699 = vpop.permute.xlu0 %1698
          %1701 = vset.pattern.permute.xlu0 0
          %1702 = vperm.xlu0 %1701, %v1688
          %v1703 = vpop.permute.xlu0 %1702
          %v1705 = vmul.f32 %v1661, %v1691
          %v1706 = vmul.f32 %v1662, %v1691
          %v1707 = vmul.f32 %v1663, %v1695
          %v1708 = vmul.f32 %v1664, %v1695
          %v1709 = vmul.f32 %v1665, %v1699
          %v1710 = vmul.f32 %v1666, %v1699
          %v1711 = vmul.f32 %v1667, %v1703
          %v1712 = vmul.f32 %v1668, %v1703
          %v1717 = vlaneseq
          %v1718 = vshrl.u32 %v1717, 7
          %v1719 = vsub.s32 0, %v1718
          %v1720 = vrot.slane %v1655, %v1719
          %v1721 = vlaneseq
          %v1722 = vshrl.u32 %v1721, 7
          %v1723 = vsub.s32 0, %v1722
          %v1724 = vrot.slane %v1656, %v1723
          %v1725 = vlaneseq
          %v1726 = vshrl.u32 %v1725, 7
          %v1727 = vsub.s32 0, %v1726
          %v1728 = vrot.slane %v1657, %v1727
          %v1729 = vlaneseq
          %v1730 = vshrl.u32 %v1729, 7
          %v1731 = vsub.s32 0, %v1730
          %v1732 = vrot.slane %v1658, %v1731
          %1733 = vset.pattern.permute.xlu0 0
          %1734 = vperm.xlu0 %1733, %v1720
          %v1735 = vpop.permute.xlu0 %1734
          %1737 = vset.pattern.permute.xlu0 0
          %1738 = vperm.xlu0 %1737, %v1724
          %v1739 = vpop.permute.xlu0 %1738
          %1741 = vset.pattern.permute.xlu0 0
          %1742 = vperm.xlu0 %1741, %v1728
          %v1743 = vpop.permute.xlu0 %1742
          %1745 = vset.pattern.permute.xlu0 0
          %1746 = vperm.xlu0 %1745, %v1732
          %v1747 = vpop.permute.xlu0 %1746
          %v1749 = vadd.f32 %v1705, %v1735
          %v1750 = vadd.f32 %v1706, %v1735
          %v1751 = vadd.f32 %v1707, %v1739
          %v1752 = vadd.f32 %v1708, %v1739
          %v1753 = vadd.f32 %v1709, %v1743
          %v1754 = vadd.f32 %v1710, %v1743
          %v1755 = vadd.f32 %v1711, %v1747
          %v1756 = vadd.f32 %v1712, %v1747
          %v1757 = vmul.f32 %v1749, 0.5
          %v1758 = vmul.f32 %v1750, 0.5
          %v1759 = vmul.f32 %v1751, 0.5
          %v1760 = vmul.f32 %v1752, 0.5
          %v1761 = vmul.f32 %v1753, 0.5
          %v1762 = vmul.f32 %v1754, 0.5
          %v1763 = vmul.f32 %v1755, 0.5
          %v1764 = vmul.f32 %v1756, 0.5
          %v1765 = vtanh.pop %v1757
          %v1766 = vtanh.pop %v1758
          %v1767 = vtanh.pop %v1759
          %v1768 = vtanh.pop %v1760
          %v1769 = vtanh.pop %v1761
          %v1770 = vtanh.pop %v1762
          %v1771 = vtanh.pop %v1763
          %v1772 = vtanh.pop %v1764
          %v1773 = vmul.f32 %v1765, 0.5
          %v1774 = vmul.f32 %v1766, 0.5
          %v1775 = vmul.f32 %v1767, 0.5
          %v1776 = vmul.f32 %v1768, 0.5
          %v1777 = vmul.f32 %v1769, 0.5
          %v1778 = vmul.f32 %v1770, 0.5
          %v1779 = vmul.f32 %v1771, 0.5
          %v1780 = vmul.f32 %v1772, 0.5
          %v1781 = vadd.f32 %v1773, 0.5
          %v1782 = vadd.f32 %v1774, 0.5
          %v1783 = vadd.f32 %v1775, 0.5
          %v1784 = vadd.f32 %v1776, 0.5
          %v1785 = vadd.f32 %v1777, 0.5
          %v1786 = vadd.f32 %v1778, 0.5
          %v1787 = vadd.f32 %v1779, 0.5
          %v1788 = vadd.f32 %v1780, 0.5
          %v1789 = vmul.f32 %v1749, %v1781
          %v1790 = vmul.f32 %v1750, %v1782
          %v1791 = vmul.f32 %v1751, %v1783
          %v1792 = vmul.f32 %v1752, %v1784
          %v1793 = vmul.f32 %v1753, %v1785
          %v1794 = vmul.f32 %v1754, %v1786
          %v1795 = vmul.f32 %v1755, %v1787
          %v1796 = vmul.f32 %v1756, %v1788
          %vm1797 = vcmask 130048
          %v1798 = vsel %vm1797, %v1789, 0.0
          %v1799 = vsel %vm1797, %v1791, 0.0
          %v1800 = vadd.f32 %v1798, %v1799
          %v1801 = vsel %vm1797, %v1793, 0.0
          %v1802 = vadd.f32 %v1800, %v1801
          %v1803 = vsel %vm1797, %v1795, 0.0
          %v1804 = vadd.f32 %v1802, %v1803
          %v1805 = vsel %vm1797, %v1790, 0.0
          %v1806 = vsel %vm1797, %v1792, 0.0
          %v1807 = vadd.f32 %v1805, %v1806
          %v1808 = vsel %vm1797, %v1794, 0.0
          %v1809 = vadd.f32 %v1807, %v1808
          %v1810 = vsel %vm1797, %v1796, 0.0
          %v1811 = vadd.f32 %v1809, %v1810
          %v1812 = vmax.f32 %v1804, 0.0
          %v1813 = vmax.f32 %v1811, 0.0
          %v1814 = vmin.f32 %v1812, 1.0
          %v1815 = vmin.f32 %v1813, 1.0
          %v1816 = vmul.f32 %v1814, 0.5
          %v1817 = vmul.f32 %v1815, 0.5
          %v1818 = vtanh.pop %v1816
          %v1819 = vtanh.pop %v1817
          %v1820 = vmul.f32 %v1818, 0.5
          %v1821 = vmul.f32 %v1819, 0.5
          %v1822 = vadd.f32 %v1820, 0.5
          %v1823 = vadd.f32 %v1821, 0.5
          %v1824 = vmul.f32 %v1822, %v1814
          %v1825 = vmul.f32 %v1823, %v1815
          %v1826 = vadd.f32 %v1824, %v1814
          %v1827 = vadd.f32 %v1825, %v1815
          %1828 = vst.msk [vmem:[%s208] sm:$0xff] %vm1797, %v1826
          %1829 = vst.msk [vmem:[%s208 + $0x8] sm:$0xff] %vm1797, %v1827
        $region48: #{efe_forward.1} parent=31 // pred_fallthru
          _
        %s1830 = sand.u32 %s114, 1
        %s1831 = scalar_lea.sflag [#allocation8], %s1830
        %s1832 = sand.u32 %s114, 1
        %s1833 = smul.addr %s1832, 16
        %s1834 = scalar_lea.vmem [#allocation9], %s1833
        // Predicated region
        $region49: #{efe_forward.1} parent=31 // pred_check
          %p1835 = pneg %p124
        $region50: #{efe_forward.1} parent=31 // pred_check_branch
          %1837 = sbr.rel (%p1835) target = $region52
        $region51: #{efe_forward.1} parent=31 // pred_region
          %s1838 = smul.u32 %s25, %s24
          %s1840 = ssub.s32 256, 256
          %1841 = vsyncadd %s1831, %s1840
          %s1842 = smul.addr %s1838, 2
          %s1843 = smul.addr %s1842, 128
          %s1844 = scalar_lea.hbm %s3, %s1843
          %s1845 = sshll.u32 %s1834, 4
          %s1846 = int_to_ptr.vmem [resolvable:$true] %s1845
          %1851 = dma.vmem_to_hbm [thread:$0]  %s1846, 256, %s1844, %s1831, 128, 128, 8
        $region52: #{efe_forward.1} parent=31 // pred_fallthru
          _
      $region32: #{efe_forward.1} parent=5 // pred_fallthru
        _
      %p1852 = scmp.le.s32.totalorder 2, %s15
      // Predicated region
      $region53: #{efe_forward.1} parent=5 // pred_check
        %p1853 = pneg %p1852
      $region54: #{efe_forward.1} parent=5 // pred_check_branch
        %1855 = sbr.rel (%p1853) target = $region56
      $region55: #{efe_forward.1} parent=5 // pred_region
        %s1856 = ssub.s32 %s15, 2
        // Predicated region
        $region57: #{efe_forward.1} parent=55 // pred_check
          %p1857 = pneg %p130
        $region58: #{efe_forward.1} parent=55 // pred_check_branch
          %1859 = sbr.rel (%p1857) target = $region60
        $region59: #{efe_forward.1} parent=55 // pred_region
          %s1860 = sand.u32 %s115, 1
          %s1861 = scalar_lea.sflag [#allocation8], %s1860
          %s1862 = sand.u32 %s115, 1
          %s1863 = smul.addr %s1862, 16
          %s1864 = scalar_lea.vmem [#allocation9], %s1863
          %1865 = dma.done %s1861, 256
        $region60: #{efe_forward.1} parent=55 // pred_fallthru
          _
      $region56: #{efe_forward.1} parent=5 // pred_fallthru
        _
    $region6: #{efe_forward.1} parent=1 // loop_footer
      %s19 = sadd.s32 1, %s15
    $region7: #{efe_forward.1} parent=1 // loop_footer_branch
      %14 = sbr.rel target = $region3
    $region8: #{efe_forward.1} parent=1 // loop_exit
      _
    %1866 = vsyncpa [#allocation7], 1
    %s1867 = scalar_lea.sflag [#allocation7], 1
    %1868 = vsyncpa %s1867, 1
    %1869 = vsyncpa [#allocation8], 1
    %s1870 = scalar_lea.sflag [#allocation8], 1
    %1871 = vsyncpa %s1870, 1

</llo_original>
